<compile_context>
chip_gen: v5e
topology: v5e:2x2
jax: 0.10.0
libtpu: 0.0.40
codegen_flags: <defaults>
</compile_context>

<pallas_src>
import functools

import jax
import jax.numpy as jnp
import numpy as np
from jax import lax
from jax.experimental import pallas as pl
from jax.experimental.pallas import tpu as pltpu

LANE = 128
_VMEM_LIMIT = 32 * 1024 * 1024


# ----------------------------- small helpers -------------------------------

def _round_up(v, m):
    return (v + m - 1) // m * m


def _pad_last(a, target):
    pad = target - a.shape[-1]
    if pad == 0:
        return a
    cfg = [(0, 0)] * (a.ndim - 1) + [(0, pad)]
    return jnp.pad(a, cfg)


def _pad_vec(v, target, fill):
    pad = target - v.shape[0]
    if pad == 0:
        return v
    return jnp.concatenate([v, jnp.full((pad,), fill, v.dtype)])


def _pad_w(w, ci_p, co_p):
    return jnp.pad(w, ((0, 0), (0, 0),
                       (0, ci_p - w.shape[-2]),
                       (0, co_p - w.shape[-1])))


# ----------------------------- Pallas kernels -------------------------------

def _conv3x3_accumulate(x_ref, m_ref, s_ref, b_ref, w_ref, a_scratch,
                        stride, Ho, Wo):
    """relu(x*scale+bias)*mask, then accumulate the 9 conv taps on the MXU."""
    scale = s_ref[...].reshape(1, 1, 1, -1)
    bias = b_ref[...].reshape(1, 1, 1, -1)
    # fused pre-activation in f32, cast once to bf16 for the MXU
    a = jnp.maximum(x_ref[...] * scale + bias, 0.0) * m_ref[...]
    a_scratch[...] = a.astype(a_scratch.dtype)

    cop = w_ref.shape[-1]
    acc = jnp.zeros((Ho * Wo, cop), jnp.float32)
    t = 0
    for kh in range(3):
        for kw in range(3):
            # phase-decomposed indexing: row kh (stride s) lives in phase
            # kh % s at row offset kh // s (likewise for columns).
            pq = (kh % stride) * stride + (kw % stride)
            r0 = kh // stride
            c0 = kw // stride
            tap = a_scratch[pq, r0:r0 + Ho, c0:c0 + Wo, :]
            tap = tap.reshape(Ho * Wo, tap.shape[-1])
            acc = acc + jnp.dot(tap, w_ref[t],
                                preferred_element_type=jnp.float32)
            t += 1
    return acc


def _conv3x3_stats_kernel(x_ref, m_ref, s_ref, b_ref, w_ref,
                          o_ref, st_ref, a_scratch, *, stride, Ho, Wo):
    # fused relu(bn) + 3x3 conv; also emits per-image BN statistics
    acc = _conv3x3_accumulate(x_ref, m_ref, s_ref, b_ref, w_ref, a_scratch,
                              stride, Ho, Wo)
    o_ref[0] = acc.astype(o_ref.dtype)
    st_ref[0, 0:1, :] = jnp.sum(acc, axis=0, keepdims=True)
    st_ref[0, 1:2, :] = jnp.sum(acc * acc, axis=0, keepdims=True)


def _conv3x3_res_kernel(x_ref, m_ref, s_ref, b_ref, w_ref, r_ref,
                        o_ref, a_scratch, *, stride, Ho, Wo):
    # fused relu(bn) + 3x3 conv + residual add
    acc = _conv3x3_accumulate(x_ref, m_ref, s_ref, b_ref, w_ref, a_scratch,
                              stride, Ho, Wo)
    o_ref[0] = (acc + r_ref[0]).astype(o_ref.dtype)


def _act_matmul_kernel(x_ref, s_ref, b_ref, w_ref, o_ref):
    # relu(x*scale+bias) @ w  -- fused pre-activation 1x1 (shortcut) conv
    a = jnp.maximum(x_ref[...] * s_ref[...] + b_ref[...], 0.0)
    o_ref[...] = jnp.dot(a.astype(jnp.bfloat16), w_ref[...],
                         preferred_element_type=jnp.float32)


# ------------------------------ wrappers ------------------------------------

def conv3x3_pre_act(x, scale, bias, w, stride, residual=None):
    """Fused relu(x*scale+bias) -> 3x3 conv (padding=1, given stride).

    x: (N, H, W, C) f32 with C lane-padded; w: (3, 3, C, Co) with Co padded.
    residual: optional (N, Ho*Wo, Co) f32 added to the conv output.
    Returns (N, Ho, Wo, Co) f32 and, when residual is None, a (N, 2, Co)
    [sum, sum-of-squares] tensor for the following BatchNorm.
    """
    N, H, W, C = x.shape
    Co = w.shape[-1]
    s = int(stride)
    Ho = (H - 1) // s + 1
    Wo = (W - 1) // s + 1
    Hp, Wp = H + 2, W + 2
    PH = -(-Hp // s)
    PW = -(-Wp // s)

    # Spatial zero-pad + phase decomposition (wrapper glue, ~1x traffic) so
    # the kernel only ever reads unstrided static slices, even for stride > 1.
    xpad = jnp.pad(x, ((0, 0), (1, 1), (1, 1), (0, 0)))
    mask = jnp.pad(jnp.ones((H, W), jnp.float32), ((1, 1), (1, 1)))
    eh, ew = PH * s - Hp, PW * s - Wp
    if eh or ew:
        xpad = jnp.pad(xpad, ((0, 0), (0, eh), (0, ew), (0, 0)))
        mask = jnp.pad(mask, ((0, eh), (0, ew)))
    xph = xpad.reshape(N, PH, s, PW, s, C).transpose(0, 2, 4, 1, 3, 5)
    xph = xph.reshape(N * s * s, PH, PW, C)
    mph = mask.reshape(PH, s, PW, s).transpose(1, 3, 0, 2)
    mph = mph.reshape(s * s, PH, PW, 1)

    scale = scale.reshape(1, C).astype(jnp.float32)
    bias = bias.reshape(1, C).astype(jnp.float32)
    w9 = w.reshape(9, C, Co).astype(jnp.bfloat16)        # bf16 MXU operand

    x_spec = pl.BlockSpec((s * s, PH, PW, C), lambda n: (n, 0, 0, 0))
    m_spec = pl.BlockSpec((s * s, PH, PW, 1), lambda n: (0, 0, 0, 0))
    v_spec = pl.BlockSpec((1, C), lambda n: (0, 0))
    w_spec = pl.BlockSpec((9, C, Co), lambda n: (0, 0, 0))
    o_spec = pl.BlockSpec((1, Ho * Wo, Co), lambda n: (n, 0, 0))
    scratch = [pltpu.VMEM((s * s, PH, PW, C), jnp.bfloat16)]
    cp = pltpu.CompilerParams(dimension_semantics=("parallel",),
                              vmem_limit_bytes=_VMEM_LIMIT)

    if residual is not None:
        kern = functools.partial(_conv3x3_res_kernel, stride=s, Ho=Ho, Wo=Wo)
        out = pl.pallas_call(
            kern,
            out_shape=jax.ShapeDtypeStruct((N, Ho * Wo, Co), jnp.float32),
            grid=(N,),
            in_specs=[x_spec, m_spec, v_spec, v_spec, w_spec,
                      pl.BlockSpec((1, Ho * Wo, Co), lambda n: (n, 0, 0))],
            out_specs=o_spec,
            scratch_shapes=scratch,
            compiler_params=cp,
        )(xph, mph, scale, bias, w9, residual)
        return out.reshape(N, Ho, Wo, Co)

    kern = functools.partial(_conv3x3_stats_kernel, stride=s, Ho=Ho, Wo=Wo)
    out, stats = pl.pallas_call(
        kern,
        out_shape=(jax.ShapeDtypeStruct((N, Ho * Wo, Co), jnp.float32),
                   jax.ShapeDtypeStruct((N, 2, Co), jnp.float32)),
        grid=(N,),
        in_specs=[x_spec, m_spec, v_spec, v_spec, w_spec],
        out_specs=(o_spec, pl.BlockSpec((1, 2, Co), lambda n: (n, 0, 0))),
        scratch_shapes=scratch,
        compiler_params=cp,
    )(xph, mph, scale, bias, w9)
    return out.reshape(N, Ho, Wo, Co), stats


def act_matmul(x, scale, bias, w, block_m=256):
    """relu(x*scale+bias) @ w, tiled over rows.  x: (M, K), w: (K, N)."""
    M, K = x.shape
    Nc = w.shape[1]
    tm = block_m if M >= block_m else _round_up(M, 8)
    Mp = _round_up(M, tm)
    if Mp != M:
        x = jnp.pad(x, ((0, Mp - M), (0, 0)))
    scale = scale.reshape(1, K).astype(jnp.float32)
    bias = bias.reshape(1, K).astype(jnp.float32)
    w = w.astype(jnp.bfloat16)                            # bf16 MXU operand
    out = pl.pallas_call(
        _act_matmul_kernel,
        out_shape=jax.ShapeDtypeStruct((Mp, Nc), jnp.float32),
        grid=(Mp // tm,),
        in_specs=[pl.BlockSpec((tm, K), lambda i: (i, 0)),
                  pl.BlockSpec((1, K), lambda i: (0, 0)),
                  pl.BlockSpec((1, K), lambda i: (0, 0)),
                  pl.BlockSpec((K, Nc), lambda i: (0, 0))],
        out_specs=pl.BlockSpec((tm, Nc), lambda i: (i, 0)),
        compiler_params=pltpu.CompilerParams(
            dimension_semantics=("parallel",),
            vmem_limit_bytes=_VMEM_LIMIT),
    )(x, scale, bias, w)
    return out[:M]


# --------------------------- BasicBlock forward -----------------------------

def basic_block(x_nchw, params, stride, eps=1e-5):
    x = jnp.transpose(x_nchw, (0, 2, 3, 1)).astype(jnp.float32)   # NHWC
    N, H, W, Cin = x.shape
    Cout = params['w1'].shape[-1]
    equal = (Cin == Cout)
    Cip = _round_up(Cin, LANE)
    Cop = _round_up(Cout, LANE)

    # ---- bn1 folded to per-channel scale/bias (training-mode batch stats) --
    m1 = jnp.mean(x, axis=(0, 1, 2))
    v1 = jnp.var(x, axis=(0, 1, 2))
    inv1 = params['g1'] / jnp.sqrt(v1 + eps)
    s1 = _pad_vec(inv1, Cip, 1.0)
    b1 = _pad_vec(params['be1'] - m1 * inv1, Cip, 0.0)

    xp = _pad_last(x, Cip)                                # lane-dense channels
    w1 = _pad_w(params['w1'], Cip, Cop)
    w2 = _pad_w(params['w2'], Cop, Cop)

    Ho = (H - 1) // stride + 1
    Wo = (W - 1) // stride + 1

    # ---- conv1: fused relu(bn1(x)) -> 3x3 stride-s conv; emits bn2 stats ---
    out1, st = conv3x3_pre_act(xp, s1, b1, w1, stride)    # (N,Ho,Wo,Cop)

    # ---- bn2 scale/bias from the fused in-kernel partial sums --------------
    cnt = N * Ho * Wo
    ssum = jnp.sum(st[:, 0, :Cout], axis=0)
    ssq = jnp.sum(st[:, 1, :Cout], axis=0)
    m2 = ssum / cnt
    v2 = jnp.maximum(ssq / cnt - m2 * m2, 0.0)
    inv2 = params['g2'] / jnp.sqrt(v2 + eps)
    s2 = _pad_vec(inv2, Cop, 1.0)
    b2 = _pad_vec(params['be2'] - m2 * inv2, Cop, 0.0)

    # ---- shortcut branch ----------------------------------------------------
    if equal:
        assert stride == 1, "identity shortcut requires stride == 1"
        res = xp.reshape(N, H * W, Cip)                   # raw x
    else:
        # 1x1 stride-s conv on relu(bn1(x)), fused in the act_matmul kernel
        xs = xp[:, ::stride, ::stride, :]
        ws = _pad_w(params['ws'], Cip, Cop).reshape(Cip, Cop)
        res = act_matmul(xs.reshape(-1, Cip), s1, b1, ws)
        res = res.reshape(N, Ho * Wo, Cop)

    # TODO(synk): dropout (droprate > 0) not implemented; default droprate=0.0.

    # ---- conv2: fused relu(bn2) -> 3x3 stride-1 conv + residual add --------
    out = conv3x3_pre_act(out1, s2, b2, w2, 1, residual=res)   # (N,Ho,Wo,Cop)
    out = out[..., :Cout]
    return jnp.transpose(out, (0, 3, 1, 2))               # back to NCHW


# ------------------------------ reference -----------------------------------

def reference(x_nchw, params, stride, eps=1e-5):
    x = jnp.transpose(x_nchw, (0, 2, 3, 1)).astype(jnp.float32)

    def bn(t, g, b):
        m = jnp.mean(t, axis=(0, 1, 2))
        v = jnp.var(t, axis=(0, 1, 2))
        return (t - m) / jnp.sqrt(v + eps) * g + b

    dn = ('NHWC', 'HWIO', 'NHWC')
    equal = x.shape[-1] == params['w1'].shape[-1]
    pre1 = jax.nn.relu(bn(x, params['g1'], params['be1']))
    o = lax.conv_general_dilated(pre1, params['w1'], (stride, stride),
                                 ((1, 1), (1, 1)), dimension_numbers=dn)
    o = jax.nn.relu(bn(o, params['g2'], params['be2']))
    o = lax.conv_general_dilated(o, params['w2'], (1, 1),
                                 ((1, 1), (1, 1)), dimension_numbers=dn)
    if equal:
        sc = x
    else:
        sc = lax.conv_general_dilated(pre1, params['ws'], (stride, stride),
                                      'VALID', dimension_numbers=dn)
    return jnp.transpose(sc + o, (0, 3, 1, 2))


# ------------------------------ params ---------------------------------------

def init_params(key, in_planes, out_planes, stride):
    ks = jax.random.split(key, 8)

    def n(k, shp, s=0.1):
        return s * jax.random.normal(k, shp, dtype=jnp.float32)

    p = {
        'g1': 1.0 + n(ks[0], (in_planes,)),
        'be1': n(ks[1], (in_planes,)),
        'g2': 1.0 + n(ks[2], (out_planes,)),
        'be2': n(ks[3], (out_planes,)),
        'w1': n(ks[4], (3, 3, in_planes, out_planes), 0.2),
        'w2': n(ks[5], (3, 3, out_planes, out_planes), 0.2),
    }
    if in_planes != out_planes:
        p['ws'] = n(ks[6], (1, 1, in_planes, out_planes), 0.3)
    return p


# -------------------------------- main ---------------------------------------

if __name__ == "__main__":
    root = jax.random.PRNGKey(0)
    configs = [
        # (N, Cin, H, W, out_planes, stride)
        (2, 16, 16, 16, 32, 2),   # channel-expanding, stride-2, conv shortcut
        (2, 32, 8, 8, 32, 1),     # equal in/out channels, identity shortcut
    ]
    for i, (N, Cin, H, W, Cout, stride) in enumerate(configs):
        kx, kp = jax.random.split(jax.random.fold_in(root, i))
        x_nchw = jax.random.normal(kx, (N, Cin, H, W), dtype=jnp.float32)
        params = init_params(kp, Cin, Cout, stride)

        out = jax.block_until_ready(basic_block(x_nchw, params, stride))
        ref = reference(x_nchw, params, stride)
        assert out.shape == ref.shape, (out.shape, ref.shape)
        # bf16 MXU operands through two chained convs + batch-norm -> relaxed
        # tolerance vs. the f32 reference.
        np.testing.assert_allclose(np.asarray(out), np.asarray(ref),
                                   rtol=2e-2, atol=8e-2)
    print("KERNEL_OK")
</pallas_src>

<mosaic_0001>
module attributes {stable_mosaic.version = 11 : i64} {
  func.func @_conv3x3_stats_kernel(%arg0: i32, %arg1: memref<4x9x9x128xf32, #tpu.memory_space<vmem>>, %arg2: memref<4x9x9x1xf32, #tpu.memory_space<vmem>>, %arg3: memref<1x128xf32, #tpu.memory_space<vmem>>, %arg4: memref<1x128xf32, #tpu.memory_space<vmem>>, %arg5: memref<9x128x128xbf16, #tpu.memory_space<vmem>>, %arg6: memref<1x64x128xf32, #tpu.memory_space<vmem>>, %arg7: memref<1x2x128xf32, #tpu.memory_space<vmem>>, %arg8: memref<4x9x9x128xbf16, #tpu.memory_space<vmem>>) attributes {dimension_semantics = [#tpu.dimension_semantics<parallel>], iteration_bounds = array<i64: 2>, scalar_prefetch = 0 : i64, scratch_operands = 1 : i64, tpu.core_type = #tpu.core_type<tc>, window_params = [{transform_indices = @transform_0, window_bounds = array<i64: 4, 9, 9, 128>}, {pipeline_mode = #tpu.pipeline_mode<synchronous>, transform_indices = @transform_1, window_bounds = array<i64: 4, 9, 9, 1>}, {pipeline_mode = #tpu.pipeline_mode<synchronous>, transform_indices = @transform_2, window_bounds = array<i64: 1, 128>}, {pipeline_mode = #tpu.pipeline_mode<synchronous>, transform_indices = @transform_3, window_bounds = array<i64: 1, 128>}, {pipeline_mode = #tpu.pipeline_mode<synchronous>, transform_indices = @transform_4, window_bounds = array<i64: 9, 128, 128>}, {transform_indices = @transform_5, window_bounds = array<i64: 1, 64, 128>}, {transform_indices = @transform_6, window_bounds = array<i64: 1, 2, 128>}]} {
    %c0 = arith.constant 0 : index
    %c0_0 = arith.constant 0 : index
    %0 = vector.load %arg3[%c0, %c0_0] : memref<1x128xf32, #tpu.memory_space<vmem>>, vector<1x128xf32>
    %1 = vector.shape_cast %0 : vector<1x128xf32> to vector<1x1x1x128xf32>
    %c0_1 = arith.constant 0 : index
    %c0_2 = arith.constant 0 : index
    %2 = vector.load %arg4[%c0_1, %c0_2] : memref<1x128xf32, #tpu.memory_space<vmem>>, vector<1x128xf32>
    %3 = vector.shape_cast %2 : vector<1x128xf32> to vector<1x1x1x128xf32>
    %c0_3 = arith.constant 0 : index
    %c0_4 = arith.constant 0 : index
    %c0_5 = arith.constant 0 : index
    %c0_6 = arith.constant 0 : index
    %4 = vector.load %arg1[%c0_3, %c0_4, %c0_5, %c0_6] : memref<4x9x9x128xf32, #tpu.memory_space<vmem>>, vector<4x9x9x128xf32>
    %5 = vector.broadcast %1 : vector<1x1x1x128xf32> to vector<4x9x9x128xf32>
    %6 = arith.mulf %4, %5 : vector<4x9x9x128xf32>
    %7 = vector.broadcast %3 : vector<1x1x1x128xf32> to vector<4x9x9x128xf32>
    %8 = arith.addf %6, %7 : vector<4x9x9x128xf32>
    %cst = arith.constant 0.000000e+00 : f32
    %9 = vector.broadcast %cst : f32 to vector<4x9x9x128xf32>
    %10 = arith.maximumf %8, %9 : vector<4x9x9x128xf32>
    %c0_7 = arith.constant 0 : index
    %c0_8 = arith.constant 0 : index
    %c0_9 = arith.constant 0 : index
    %c0_10 = arith.constant 0 : index
    %11 = vector.load %arg2[%c0_7, %c0_8, %c0_9, %c0_10] : memref<4x9x9x1xf32, #tpu.memory_space<vmem>>, vector<4x9x9x1xf32>
    %12 = vector.broadcast %11 : vector<4x9x9x1xf32> to vector<4x9x9x128xf32>
    %13 = arith.mulf %10, %12 : vector<4x9x9x128xf32>
    %14 = arith.truncf %13 : vector<4x9x9x128xf32> to vector<4x9x9x128xbf16>
    %c0_11 = arith.constant 0 : index
    %c0_12 = arith.constant 0 : index
    %c0_13 = arith.constant 0 : index
    %c0_14 = arith.constant 0 : index
    %15 = vector.load %arg8[%c0_11, %c0_12, %c0_13, %c0_14] : memref<4x9x9x128xbf16, #tpu.memory_space<vmem>>, vector<4x9x9x128xbf16>
    tpu.vector_store %arg8[%c0_11, %c0_12, %c0_13, %c0_14], %14 {strides = array<i32>} : memref<4x9x9x128xbf16, #tpu.memory_space<vmem>>, vector<4x9x9x128xbf16>,
    %cst_15 = arith.constant 0.000000e+00 : f32
    %16 = vector.broadcast %cst_15 : f32 to vector<64x128xf32>
    %c0_16 = arith.constant 0 : index
    %c0_17 = arith.constant 0 : index
    %c0_18 = arith.constant 0 : index
    %c0_19 = arith.constant 0 : index
    %17 = vector.load %arg8[%c0_16, %c0_17, %c0_18, %c0_19] : memref<4x9x9x128xbf16, #tpu.memory_space<vmem>>, vector<1x8x8x128xbf16>
    %18 = vector.shape_cast %17 : vector<1x8x8x128xbf16> to vector<8x8x128xbf16>
    %19 = vector.shape_cast %18 : vector<8x8x128xbf16> to vector<64x128xbf16>
    %c0_20 = arith.constant 0 : index
    %c0_21 = arith.constant 0 : index
    %c0_22 = arith.constant 0 : index
    %20 = vector.load %arg5[%c0_20, %c0_21, %c0_22] : memref<9x128x128xbf16, #tpu.memory_space<vmem>>, vector<1x128x128xbf16>
    %21 = vector.shape_cast %20 : vector<1x128x128xbf16> to vector<128x128xbf16>
    %cst_23 = arith.constant dense<0.000000e+00> : vector<64x128xf32>
    %22 = tpu.matmul %19, %21, %cst_23 {dimension_numbers = #tpu.dot_dimension_numbers<[1], [0], [0], [1], [0, 0, 1, 1], [], []>} : vector<64x128xbf16>, vector<128x128xbf16>, vector<64x128xf32> -> vector<64x128xf32>
    %23 = arith.addf %16, %22 : vector<64x128xf32>
    %c1 = arith.constant 1 : index
    %c0_24 = arith.constant 0 : index
    %c0_25 = arith.constant 0 : index
    %c0_26 = arith.constant 0 : index
    %24 = vector.load %arg8[%c1, %c0_24, %c0_25, %c0_26] : memref<4x9x9x128xbf16, #tpu.memory_space<vmem>>, vector<1x8x8x128xbf16>
    %25 = vector.shape_cast %24 : vector<1x8x8x128xbf16> to vector<8x8x128xbf16>
    %26 = vector.shape_cast %25 : vector<8x8x128xbf16> to vector<64x128xbf16>
    %c1_27 = arith.constant 1 : index
    %c0_28 = arith.constant 0 : index
    %c0_29 = arith.constant 0 : index
    %27 = vector.load %arg5[%c1_27, %c0_28, %c0_29] : memref<9x128x128xbf16, #tpu.memory_space<vmem>>, vector<1x128x128xbf16>
    %28 = vector.shape_cast %27 : vector<1x128x128xbf16> to vector<128x128xbf16>
    %cst_30 = arith.constant dense<0.000000e+00> : vector<64x128xf32>
    %29 = tpu.matmul %26, %28, %cst_30 {dimension_numbers = #tpu.dot_dimension_numbers<[1], [0], [0], [1], [0, 0, 1, 1], [], []>} : vector<64x128xbf16>, vector<128x128xbf16>, vector<64x128xf32> -> vector<64x128xf32>
    %30 = arith.addf %23, %29 : vector<64x128xf32>
    %c0_31 = arith.constant 0 : index
    %c0_32 = arith.constant 0 : index
    %c1_33 = arith.constant 1 : index
    %c0_34 = arith.constant 0 : index
    %31 = vector.load %arg8[%c0_31, %c0_32, %c1_33, %c0_34] : memref<4x9x9x128xbf16, #tpu.memory_space<vmem>>, vector<1x8x8x128xbf16>
    %32 = vector.shape_cast %31 : vector<1x8x8x128xbf16> to vector<8x8x128xbf16>
    %33 = vector.shape_cast %32 : vector<8x8x128xbf16> to vector<64x128xbf16>
    %c2 = arith.constant 2 : index
    %c0_35 = arith.constant 0 : index
    %c0_36 = arith.constant 0 : index
    %34 = vector.load %arg5[%c2, %c0_35, %c0_36] : memref<9x128x128xbf16, #tpu.memory_space<vmem>>, vector<1x128x128xbf16>
    %35 = vector.shape_cast %34 : vector<1x128x128xbf16> to vector<128x128xbf16>
    %cst_37 = arith.constant dense<0.000000e+00> : vector<64x128xf32>
    %36 = tpu.matmul %33, %35, %cst_37 {dimension_numbers = #tpu.dot_dimension_numbers<[1], [0], [0], [1], [0, 0, 1, 1], [], []>} : vector<64x128xbf16>, vector<128x128xbf16>, vector<64x128xf32> -> vector<64x128xf32>
    %37 = arith.addf %30, %36 : vector<64x128xf32>
    %c2_38 = arith.constant 2 : index
    %c0_39 = arith.constant 0 : index
    %c0_40 = arith.constant 0 : index
    %c0_41 = arith.constant 0 : index
    %38 = vector.load %arg8[%c2_38, %c0_39, %c0_40, %c0_41] : memref<4x9x9x128xbf16, #tpu.memory_space<vmem>>, vector<1x8x8x128xbf16>
    %39 = vector.shape_cast %38 : vector<1x8x8x128xbf16> to vector<8x8x128xbf16>
    %40 = vector.shape_cast %39 : vector<8x8x128xbf16> to vector<64x128xbf16>
    %c3 = arith.constant 3 : index
    %c0_42 = arith.constant 0 : index
    %c0_43 = arith.constant 0 : index
    %41 = vector.load %arg5[%c3, %c0_42, %c0_43] : memref<9x128x128xbf16, #tpu.memory_space<vmem>>, vector<1x128x128xbf16>
    %42 = vector.shape_cast %41 : vector<1x128x128xbf16> to vector<128x128xbf16>
    %cst_44 = arith.constant dense<0.000000e+00> : vector<64x128xf32>
    %43 = tpu.matmul %40, %42, %cst_44 {dimension_numbers = #tpu.dot_dimension_numbers<[1], [0], [0], [1], [0, 0, 1, 1], [], []>} : vector<64x128xbf16>, vector<128x128xbf16>, vector<64x128xf32> -> vector<64x128xf32>
    %44 = arith.addf %37, %43 : vector<64x128xf32>
    %c3_45 = arith.constant 3 : index
    %c0_46 = arith.constant 0 : index
    %c0_47 = arith.constant 0 : index
    %c0_48 = arith.constant 0 : index
    %45 = vector.load %arg8[%c3_45, %c0_46, %c0_47, %c0_48] : memref<4x9x9x128xbf16, #tpu.memory_space<vmem>>, vector<1x8x8x128xbf16>
    %46 = vector.shape_cast %45 : vector<1x8x8x128xbf16> to vector<8x8x128xbf16>
    %47 = vector.shape_cast %46 : vector<8x8x128xbf16> to vector<64x128xbf16>
    %c4 = arith.constant 4 : index
    %c0_49 = arith.constant 0 : index
    %c0_50 = arith.constant 0 : index
    %48 = vector.load %arg5[%c4, %c0_49, %c0_50] : memref<9x128x128xbf16, #tpu.memory_space<vmem>>, vector<1x128x128xbf16>
    %49 = vector.shape_cast %48 : vector<1x128x128xbf16> to vector<128x128xbf16>
    %cst_51 = arith.constant dense<0.000000e+00> : vector<64x128xf32>
    %50 = tpu.matmul %47, %49, %cst_51 {dimension_numbers = #tpu.dot_dimension_numbers<[1], [0], [0], [1], [0, 0, 1, 1], [], []>} : vector<64x128xbf16>, vector<128x128xbf16>, vector<64x128xf32> -> vector<64x128xf32>
    %51 = arith.addf %44, %50 : vector<64x128xf32>
    %c2_52 = arith.constant 2 : index
    %c0_53 = arith.constant 0 : index
    %c1_54 = arith.constant 1 : index
    %c0_55 = arith.constant 0 : index
    %52 = vector.load %arg8[%c2_52, %c0_53, %c1_54, %c0_55] : memref<4x9x9x128xbf16, #tpu.memory_space<vmem>>, vector<1x8x8x128xbf16>
    %53 = vector.shape_cast %52 : vector<1x8x8x128xbf16> to vector<8x8x128xbf16>
    %54 = vector.shape_cast %53 : vector<8x8x128xbf16> to vector<64x128xbf16>
    %c5 = arith.constant 5 : index
    %c0_56 = arith.constant 0 : index
    %c0_57 = arith.constant 0 : index
    %55 = vector.load %arg5[%c5, %c0_56, %c0_57] : memref<9x128x128xbf16, #tpu.memory_space<vmem>>, vector<1x128x128xbf16>
    %56 = vector.shape_cast %55 : vector<1x128x128xbf16> to vector<128x128xbf16>
    %cst_58 = arith.constant dense<0.000000e+00> : vector<64x128xf32>
    %57 = tpu.matmul %54, %56, %cst_58 {dimension_numbers = #tpu.dot_dimension_numbers<[1], [0], [0], [1], [0, 0, 1, 1], [], []>} : vector<64x128xbf16>, vector<128x128xbf16>, vector<64x128xf32> -> vector<64x128xf32>
    %58 = arith.addf %51, %57 : vector<64x128xf32>
    %c0_59 = arith.constant 0 : index
    %c1_60 = arith.constant 1 : index
    %c0_61 = arith.constant 0 : index
    %c0_62 = arith.constant 0 : index
    %59 = vector.load %arg8[%c0_59, %c1_60, %c0_61, %c0_62] : memref<4x9x9x128xbf16, #tpu.memory_space<vmem>>, vector<1x8x8x128xbf16>
    %60 = vector.shape_cast %59 : vector<1x8x8x128xbf16> to vector<8x8x128xbf16>
    %61 = vector.shape_cast %60 : vector<8x8x128xbf16> to vector<64x128xbf16>
    %c6 = arith.constant 6 : index
    %c0_63 = arith.constant 0 : index
    %c0_64 = arith.constant 0 : index
    %62 = vector.load %arg5[%c6, %c0_63, %c0_64] : memref<9x128x128xbf16, #tpu.memory_space<vmem>>, vector<1x128x128xbf16>
    %63 = vector.shape_cast %62 : vector<1x128x128xbf16> to vector<128x128xbf16>
    %cst_65 = arith.constant dense<0.000000e+00> : vector<64x128xf32>
    %64 = tpu.matmul %61, %63, %cst_65 {dimension_numbers = #tpu.dot_dimension_numbers<[1], [0], [0], [1], [0, 0, 1, 1], [], []>} : vector<64x128xbf16>, vector<128x128xbf16>, vector<64x128xf32> -> vector<64x128xf32>
    %65 = arith.addf %58, %64 : vector<64x128xf32>
    %c1_66 = arith.constant 1 : index
    %c1_67 = arith.constant 1 : index
    %c0_68 = arith.constant 0 : index
    %c0_69 = arith.constant 0 : index
    %66 = vector.load %arg8[%c1_66, %c1_67, %c0_68, %c0_69] : memref<4x9x9x128xbf16, #tpu.memory_space<vmem>>, vector<1x8x8x128xbf16>
    %67 = vector.shape_cast %66 : vector<1x8x8x128xbf16> to vector<8x8x128xbf16>
    %68 = vector.shape_cast %67 : vector<8x8x128xbf16> to vector<64x128xbf16>
    %c7 = arith.constant 7 : index
    %c0_70 = arith.constant 0 : index
    %c0_71 = arith.constant 0 : index
    %69 = vector.load %arg5[%c7, %c0_70, %c0_71] : memref<9x128x128xbf16, #tpu.memory_space<vmem>>, vector<1x128x128xbf16>
    %70 = vector.shape_cast %69 : vector<1x128x128xbf16> to vector<128x128xbf16>
    %cst_72 = arith.constant dense<0.000000e+00> : vector<64x128xf32>
    %71 = tpu.matmul %68, %70, %cst_72 {dimension_numbers = #tpu.dot_dimension_numbers<[1], [0], [0], [1], [0, 0, 1, 1], [], []>} : vector<64x128xbf16>, vector<128x128xbf16>, vector<64x128xf32> -> vector<64x128xf32>
    %72 = arith.addf %65, %71 : vector<64x128xf32>
    %c0_73 = arith.constant 0 : index
    %c1_74 = arith.constant 1 : index
    %c1_75 = arith.constant 1 : index
    %c0_76 = arith.constant 0 : index
    %73 = vector.load %arg8[%c0_73, %c1_74, %c1_75, %c0_76] : memref<4x9x9x128xbf16, #tpu.memory_space<vmem>>, vector<1x8x8x128xbf16>
    %74 = vector.shape_cast %73 : vector<1x8x8x128xbf16> to vector<8x8x128xbf16>
    %75 = vector.shape_cast %74 : vector<8x8x128xbf16> to vector<64x128xbf16>
    %c8 = arith.constant 8 : index
    %c0_77 = arith.constant 0 : index
    %c0_78 = arith.constant 0 : index
    %76 = vector.load %arg5[%c8, %c0_77, %c0_78] : memref<9x128x128xbf16, #tpu.memory_space<vmem>>, vector<1x128x128xbf16>
    %77 = vector.shape_cast %76 : vector<1x128x128xbf16> to vector<128x128xbf16>
    %cst_79 = arith.constant dense<0.000000e+00> : vector<64x128xf32>
    %78 = tpu.matmul %75, %77, %cst_79 {dimension_numbers = #tpu.dot_dimension_numbers<[1], [0], [0], [1], [0, 0, 1, 1], [], []>} : vector<64x128xbf16>, vector<128x128xbf16>, vector<64x128xf32> -> vector<64x128xf32>
    %79 = arith.addf %72, %78 : vector<64x128xf32>
    %c0_80 = arith.constant 0 : index
    %c0_81 = arith.constant 0 : index
    %c0_82 = arith.constant 0 : index
    %80 = vector.load %arg6[%c0_80, %c0_81, %c0_82] : memref<1x64x128xf32, #tpu.memory_space<vmem>>, vector<1x64x128xf32>
    %81 = vector.shape_cast %80 : vector<1x64x128xf32> to vector<64x128xf32>
    %82 = vector.shape_cast %79 : vector<64x128xf32> to vector<1x64x128xf32>
    tpu.vector_store %arg6[%c0_80, %c0_81, %c0_82], %82 {strides = array<i32>} : memref<1x64x128xf32, #tpu.memory_space<vmem>>, vector<1x64x128xf32>,
    %cst_83 = arith.constant dense<0.000000e+00> : vector<128xf32>
    %83 = vector.multi_reduction <add>, %79, %cst_83 [0] : vector<64x128xf32> to vector<128xf32>
    %84 = vector.shape_cast %83 : vector<128xf32> to vector<1x128xf32>
    %c0_84 = arith.constant 0 : index
    %c0_85 = arith.constant 0 : index
    %c0_86 = arith.constant 0 : index
    %85 = vector.load %arg7[%c0_84, %c0_85, %c0_86] : memref<1x2x128xf32, #tpu.memory_space<vmem>>, vector<1x1x128xf32>
    %86 = vector.shape_cast %85 : vector<1x1x128xf32> to vector<1x128xf32>
    %87 = vector.shape_cast %84 : vector<1x128xf32> to vector<1x1x128xf32>
    tpu.vector_store %arg7[%c0_84, %c0_85, %c0_86], %87 {strides = array<i32>} : memref<1x2x128xf32, #tpu.memory_space<vmem>>, vector<1x1x128xf32>,
    %88 = arith.mulf %79, %79 : vector<64x128xf32>
    %cst_87 = arith.constant dense<0.000000e+00> : vector<128xf32>
    %89 = vector.multi_reduction <add>, %88, %cst_87 [0] : vector<64x128xf32> to vector<128xf32>
    %90 = vector.shape_cast %89 : vector<128xf32> to vector<1x128xf32>
    %c0_88 = arith.constant 0 : index
    %c1_89 = arith.constant 1 : index
    %c0_90 = arith.constant 0 : index
    %91 = vector.load %arg7[%c0_88, %c1_89, %c0_90] : memref<1x2x128xf32, #tpu.memory_space<vmem>>, vector<1x1x128xf32>
    %92 = vector.shape_cast %91 : vector<1x1x128xf32> to vector<1x128xf32>
    %93 = vector.shape_cast %90 : vector<1x128xf32> to vector<1x1x128xf32>
    tpu.vector_store %arg7[%c0_88, %c1_89, %c0_90], %93 {strides = array<i32>} : memref<1x2x128xf32, #tpu.memory_space<vmem>>, vector<1x1x128xf32>,
    return
  }
  func.func @transform_0(%arg0: i32) -> (i32, i32, i32, i32) {
    %c0_i32 = arith.constant 0 : i32
    %c0_i32_0 = arith.constant 0 : i32
    %c0_i32_1 = arith.constant 0 : i32
    %c0_i32_2 = arith.constant 0 : i32
    return %arg0, %c0_i32, %c0_i32_0, %c0_i32_1 : i32, i32, i32, i32
  }
  func.func @transform_1(%arg0: i32) -> (i32, i32, i32, i32) {
    %c0_i32 = arith.constant 0 : i32
    %c0_i32_0 = arith.constant 0 : i32
    %c0_i32_1 = arith.constant 0 : i32
    %c0_i32_2 = arith.constant 0 : i32
    %c0_i32_3 = arith.constant 0 : i32
    return %c0_i32, %c0_i32_0, %c0_i32_1, %c0_i32_2 : i32, i32, i32, i32
  }
  func.func @transform_2(%arg0: i32) -> (i32, i32) {
    %c0_i32 = arith.constant 0 : i32
    %c0_i32_0 = arith.constant 0 : i32
    %c0_i32_1 = arith.constant 0 : i32
    return %c0_i32, %c0_i32_0 : i32, i32
  }
  func.func @transform_3(%arg0: i32) -> (i32, i32) {
    %c0_i32 = arith.constant 0 : i32
    %c0_i32_0 = arith.constant 0 : i32
    %c0_i32_1 = arith.constant 0 : i32
    return %c0_i32, %c0_i32_0 : i32, i32
  }
  func.func @transform_4(%arg0: i32) -> (i32, i32, i32) {
    %c0_i32 = arith.constant 0 : i32
    %c0_i32_0 = arith.constant 0 : i32
    %c0_i32_1 = arith.constant 0 : i32
    %c0_i32_2 = arith.constant 0 : i32
    return %c0_i32, %c0_i32_0, %c0_i32_1 : i32, i32, i32
  }
  func.func @transform_5(%arg0: i32) -> (i32, i32, i32) {
    %c0_i32 = arith.constant 0 : i32
    %c0_i32_0 = arith.constant 0 : i32
    %c0_i32_1 = arith.constant 0 : i32
    return %arg0, %c0_i32, %c0_i32_0 : i32, i32, i32
  }
  func.func @transform_6(%arg0: i32) -> (i32, i32, i32) {
    %c0_i32 = arith.constant 0 : i32
    %c0_i32_0 = arith.constant 0 : i32
    %c0_i32_1 = arith.constant 0 : i32
    return %arg0, %c0_i32, %c0_i32_0 : i32, i32, i32
  }
}

</mosaic_0001>

<llo_original>
// kernel: tpu_custom_call.1
$region0: #{tpu_custom_call.1}
  #allocation0 [shape = 'u32[]', space=smem, size = 0x4, offset = 0x4, fixed_abs, tag = 'smem constant byte address 0x4 - core index']
  #allocation1 [shape = 'u32[72,128]{1,0:T(1,128)}', space=vmem, size = 0x9000, scoped, tag = 'internal scratch']
  #allocation2 [shape = 'bf16[4,9,9,128]{3,2,1,0:T(8,128)(2,1)}', space=vmem, size = 0x24000, scoped, tag = 'scratch operand']
  %s0 = inlined_call_operand.vmem [shape: f32[8,9,9,128], index: 0, kind: input, shape index: {}]
  %s1 = inlined_call_operand.vmem [shape: f32[4,9,9,1], index: 1, kind: input, shape index: {}]
  %s2 = inlined_call_operand.vmem [shape: f32[1,128], index: 2, kind: input, shape index: {}]
  %s3 = inlined_call_operand.vmem [shape: f32[1,128], index: 3, kind: input, shape index: {}]
  %s4 = inlined_call_operand.vmem [shape: bf16[9,128,128], index: 4, kind: input, shape index: {}]
  %s5 = inlined_call_operand.hbm [shape: f32[2,64,128], index: 5, kind: output, shape index: {0}]
  %s6 = inlined_call_operand.hbm [shape: f32[2,2,128], index: 6, kind: output, shape index: {1}]
  %7 = xla_tuple %s5, %s6
  %s8 = sld [smem:[#allocation0]]
  $region61: #{tpu_custom_call.1} parent=0
    _
  %s10 = ssub.s32 1, %s8
  %s11 = scalar_select 0, %s10, %s8
  $region1: #{tpu_custom_call.1} parent=0
    #allocation3 [shape = 'u8[65536]{0}', space=vmem, size = 0x10000, scoped, tag = 'output window, operand 0']
    #allocation4 [shape = 's32[2]{0}', space=sflag, size = 0x8, scoped, tag = 'scoped memory for tpu_custom_call.1']
    #allocation5 [shape = 'u8[2048]{0}', space=vmem, size = 0x800, scoped, tag = 'output window, operand 1']
    #allocation6 [shape = 's32[2]{0}', space=sflag, size = 0x8, scoped, tag = 'scoped memory for tpu_custom_call.1']
    %12 = vsyncpa [#allocation4], 0
    %s13 = scalar_lea.sflag [#allocation4], 1
    %14 = vsyncpa %s13, 0
    %15 = vsyncpa [#allocation6], 0
    %s16 = scalar_lea.sflag [#allocation6], 1
    %17 = vsyncpa %s16, 0
    loop: start=0, step=1, limit=4
    $region2: #{tpu_custom_call.1} parent=1 // loop_pre_header
      _
    $region3: #{tpu_custom_call.1} parent=1 // loop_header
      %s19 = sphi 0, %s23
      %p20 = scmp.ge.s32.totalorder %s19, 4
      %s29 = sphi 0, %s31
      %s32 = sphi 0, %s29
      %s33 = sphi 0, %s32
      %s49 = sphi 0, %s33
      %s53 = sphi 0, %s53
      %s55 = sphi 0, %s53
      %s56 = sphi 0, %s55
      %s70 = sphi 0, %s56
      %s74 = sphi 0, %s74
      %s76 = sphi 0, %s74
      %s77 = sphi 0, %s76
      %s91 = sphi 0, %s77
      %s95 = sphi 0, %s95
      %s97 = sphi 0, %s95
      %s98 = sphi 0, %s97
      %s112 = sphi 0, %s98
      %s116 = sphi 0, %s116
      %s118 = sphi 0, %s116
      %s119 = sphi 0, %s118
      %s133 = sphi 0, %s119
      %s139 = sphi 0, %s141
      %s142 = sphi 0, %s139
      %s143 = sphi 0, %s142
      %s159 = sphi 0, %s143
      %s165 = sphi 0, %s167
      %s168 = sphi 0, %s165
      %s169 = sphi 0, %s168
      %s185 = sphi 0, %s169
    $region4: #{tpu_custom_call.1} parent=1 // loop_header_branch
      %22 = sbr.rel (%p20) target = $region8
    $region5: #{tpu_custom_call.1} parent=1 // loop_body
      %s24 = ssub.s32 %s19, 1
      %s25 = ssub.s32 %s19, 2
      %s26 = sadd.s32 %s19, 1
      %s27 = ssub.s32 %s19, %s26
      %p28 = scmp.eq.s32.totalorder %s27, 0
      %s30 = sadd.s32 %s29, 1
      %s31 = scalar_select %p28, %s29, %s30
      %p34 = pneg %p28
      %p35 = scmp.eq.s32.totalorder %s19, 1
      %p36 = por %p34, %p35
      %p37 = scmp.ne.s32.totalorder %s29, %s32
      %p38 = scmp.eq.s32.totalorder %s19, 0
      %p39 = por %p37, %p38
      %p40 = scmp.ne.s32.totalorder %s29, %s32
      %p41 = scmp.eq.s32.totalorder %s24, 1
      %p42 = por %p40, %p41
      %p43 = scmp.ne.s32.totalorder %s32, %s33
      %p44 = scmp.eq.s32.totalorder %s24, 0
      %p45 = por %p43, %p44
      %p46 = scmp.ne.s32.totalorder %s32, %s33
      %p47 = scmp.eq.s32.totalorder %s25, 1
      %p48 = por %p46, %p47
      %p50 = scmp.ne.s32.totalorder %s33, %s49
      %p51 = scmp.eq.s32.totalorder %s25, 0
      %p52 = por %p50, %p51
      %s54 = sadd.s32 %s53, 1
      %p57 = scmp.eq.s32.totalorder %s19, 1
      %p58 = scmp.ne.s32.totalorder %s53, %s55
      %p59 = scmp.eq.s32.totalorder %s19, 0
      %p60 = por %p58, %p59
      %p61 = scmp.ne.s32.totalorder %s53, %s55
      %p62 = scmp.eq.s32.totalorder %s24, 1
      %p63 = por %p61, %p62
      %p64 = scmp.ne.s32.totalorder %s55, %s56
      %p65 = scmp.eq.s32.totalorder %s24, 0
      %p66 = por %p64, %p65
      %p67 = scmp.ne.s32.totalorder %s55, %s56
      %p68 = scmp.eq.s32.totalorder %s25, 1
      %p69 = por %p67, %p68
      %p71 = scmp.ne.s32.totalorder %s56, %s70
      %p72 = scmp.eq.s32.totalorder %s25, 0
      %p73 = por %p71, %p72
      %s75 = sadd.s32 %s74, 1
      %p78 = scmp.eq.s32.totalorder %s19, 1
      %p79 = scmp.ne.s32.totalorder %s74, %s76
      %p80 = scmp.eq.s32.totalorder %s19, 0
      %p81 = por %p79, %p80
      %p82 = scmp.ne.s32.totalorder %s74, %s76
      %p83 = scmp.eq.s32.totalorder %s24, 1
      %p84 = por %p82, %p83
      %p85 = scmp.ne.s32.totalorder %s76, %s77
      %p86 = scmp.eq.s32.totalorder %s24, 0
      %p87 = por %p85, %p86
      %p88 = scmp.ne.s32.totalorder %s76, %s77
      %p89 = scmp.eq.s32.totalorder %s25, 1
      %p90 = por %p88, %p89
      %p92 = scmp.ne.s32.totalorder %s77, %s91
      %p93 = scmp.eq.s32.totalorder %s25, 0
      %p94 = por %p92, %p93
      %s96 = sadd.s32 %s95, 1
      %p99 = scmp.eq.s32.totalorder %s19, 1
      %p100 = scmp.ne.s32.totalorder %s95, %s97
      %p101 = scmp.eq.s32.totalorder %s19, 0
      %p102 = por %p100, %p101
      %p103 = scmp.ne.s32.totalorder %s95, %s97
      %p104 = scmp.eq.s32.totalorder %s24, 1
      %p105 = por %p103, %p104
      %p106 = scmp.ne.s32.totalorder %s97, %s98
      %p107 = scmp.eq.s32.totalorder %s24, 0
      %p108 = por %p106, %p107
      %p109 = scmp.ne.s32.totalorder %s97, %s98
      %p110 = scmp.eq.s32.totalorder %s25, 1
      %p111 = por %p109, %p110
      %p113 = scmp.ne.s32.totalorder %s98, %s112
      %p114 = scmp.eq.s32.totalorder %s25, 0
      %p115 = por %p113, %p114
      %s117 = sadd.s32 %s116, 1
      %p120 = scmp.eq.s32.totalorder %s19, 1
      %p121 = scmp.ne.s32.totalorder %s116, %s118
      %p122 = scmp.eq.s32.totalorder %s19, 0
      %p123 = por %p121, %p122
      %p124 = scmp.ne.s32.totalorder %s116, %s118
      %p125 = scmp.eq.s32.totalorder %s24, 1
      %p126 = por %p124, %p125
      %p127 = scmp.ne.s32.totalorder %s118, %s119
      %p128 = scmp.eq.s32.totalorder %s24, 0
      %p129 = por %p127, %p128
      %p130 = scmp.ne.s32.totalorder %s118, %s119
      %p131 = scmp.eq.s32.totalorder %s25, 1
      %p132 = por %p130, %p131
      %p134 = scmp.ne.s32.totalorder %s119, %s133
      %p135 = scmp.eq.s32.totalorder %s25, 0
      %p136 = por %p134, %p135
      %s137 = ssub.s32 %s19, %s26
      %p138 = scmp.eq.s32.totalorder %s137, 0
      %s140 = sadd.s32 %s139, 1
      %s141 = scalar_select %p138, %s139, %s140
      %p144 = pneg %p138
      %p145 = scmp.eq.s32.totalorder %s19, 1
      %p146 = por %p144, %p145
      %p147 = scmp.ne.s32.totalorder %s139, %s142
      %p148 = scmp.eq.s32.totalorder %s19, 0
      %p149 = por %p147, %p148
      %p150 = scmp.ne.s32.totalorder %s139, %s142
      %p151 = scmp.eq.s32.totalorder %s24, 1
      %p152 = por %p150, %p151
      %p153 = scmp.ne.s32.totalorder %s142, %s143
      %p154 = scmp.eq.s32.totalorder %s24, 0
      %p155 = por %p153, %p154
      %p156 = scmp.ne.s32.totalorder %s142, %s143
      %p157 = scmp.eq.s32.totalorder %s25, 1
      %p158 = por %p156, %p157
      %p160 = scmp.ne.s32.totalorder %s143, %s159
      %p161 = scmp.eq.s32.totalorder %s25, 0
      %p162 = por %p160, %p161
      %s163 = ssub.s32 %s19, %s26
      %p164 = scmp.eq.s32.totalorder %s163, 0
      %s166 = sadd.s32 %s165, 1
      %s167 = scalar_select %p164, %s165, %s166
      %p170 = pneg %p164
      %p171 = scmp.eq.s32.totalorder %s19, 1
      %p172 = por %p170, %p171
      %p173 = scmp.ne.s32.totalorder %s165, %s168
      %p174 = scmp.eq.s32.totalorder %s19, 0
      %p175 = por %p173, %p174
      %p176 = scmp.ne.s32.totalorder %s165, %s168
      %p177 = scmp.eq.s32.totalorder %s24, 1
      %p178 = por %p176, %p177
      %p179 = scmp.ne.s32.totalorder %s168, %s169
      %p180 = scmp.eq.s32.totalorder %s24, 0
      %p181 = por %p179, %p180
      %p182 = scmp.ne.s32.totalorder %s168, %s169
      %p183 = scmp.eq.s32.totalorder %s25, 1
      %p184 = por %p182, %p183
      %p186 = scmp.ne.s32.totalorder %s169, %s185
      %p187 = scmp.eq.s32.totalorder %s25, 0
      %p188 = por %p186, %p187
      %p189 = scmp.le.s32.totalorder 1, %s19
      %p190 = scmp.lt.s32.totalorder %s19, 3
      %p191 = pnand %p189, %p190
      %p192 = pneg %p191
      // Predicated region
      $region9: #{tpu_custom_call.1} parent=5 // pred_check
        _
      $region10: #{tpu_custom_call.1} parent=5 // pred_check_branch
        %194 = sbr.rel (%p191) target = $region12
      $region11: #{tpu_custom_call.1} parent=5 // pred_region
        %s195 = ssub.s32 %s19, 1
        // Predicated region
        $region13: #{tpu_custom_call.1} parent=11 // pred_check
          %p196 = pneg %p66
        $region14: #{tpu_custom_call.1} parent=11 // pred_check_branch
          %198 = sbr.rel (%p196) target = $region16
        $region15: #{tpu_custom_call.1} parent=11 // pred_region
          _
        $region16: #{tpu_custom_call.1} parent=11 // pred_fallthru
          _
        // Predicated region
        $region17: #{tpu_custom_call.1} parent=11 // pred_check
          %p199 = pneg %p87
        $region18: #{tpu_custom_call.1} parent=11 // pred_check_branch
          %201 = sbr.rel (%p199) target = $region20
        $region19: #{tpu_custom_call.1} parent=11 // pred_region
          _
        $region20: #{tpu_custom_call.1} parent=11 // pred_fallthru
          _
        // Predicated region
        $region21: #{tpu_custom_call.1} parent=11 // pred_check
          %p202 = pneg %p108
        $region22: #{tpu_custom_call.1} parent=11 // pred_check_branch
          %204 = sbr.rel (%p202) target = $region24
        $region23: #{tpu_custom_call.1} parent=11 // pred_region
          _
        $region24: #{tpu_custom_call.1} parent=11 // pred_fallthru
          _
        // Predicated region
        $region25: #{tpu_custom_call.1} parent=11 // pred_check
          %p205 = pneg %p129
        $region26: #{tpu_custom_call.1} parent=11 // pred_check_branch
          %207 = sbr.rel (%p205) target = $region28
        $region27: #{tpu_custom_call.1} parent=11 // pred_region
          _
        $region28: #{tpu_custom_call.1} parent=11 // pred_fallthru
          _
      $region12: #{tpu_custom_call.1} parent=5 // pred_fallthru
        _
      %p208 = scmp.lt.s32.totalorder %s19, 2
      // Predicated region
      $region29: #{tpu_custom_call.1} parent=5 // pred_check
        %p209 = pneg %p208
      $region30: #{tpu_custom_call.1} parent=5 // pred_check_branch
        %211 = sbr.rel (%p209) target = $region32
      $region31: #{tpu_custom_call.1} parent=5 // pred_region
        // Predicated region
        $region33: #{tpu_custom_call.1} parent=31 // pred_check
          %p212 = pneg %p39
        $region34: #{tpu_custom_call.1} parent=31 // pred_check_branch
          %214 = sbr.rel (%p212) target = $region36
        $region35: #{tpu_custom_call.1} parent=31 // pred_region
          %s215 = smul.u32 4, %s19
          %p216 = scmp.lt.s32.totalorder %s215, 7
          %s217 = scalar_select %p216, %s215, 7
          %s218 = smul.addr %s217, 18
          %s219 = smul.addr %s218, 8
          %s220 = scalar_lea.vmem %s0, %s219
          %s221 = smul.u32 4, %s19
        $region36: #{tpu_custom_call.1} parent=31 // pred_fallthru
          _
      $region32: #{tpu_custom_call.1} parent=5 // pred_fallthru
        _
      %p222 = scmp.le.s32.totalorder 1, %s19
      %p223 = scmp.lt.s32.totalorder %s19, 3
      %p224 = pnand %p222, %p223
      %p225 = pneg %p224
      // Predicated region
      $region37: #{tpu_custom_call.1} parent=5 // pred_check
        _
      $region38: #{tpu_custom_call.1} parent=5 // pred_check_branch
        %227 = sbr.rel (%p224) target = $region40
      $region39: #{tpu_custom_call.1} parent=5 // pred_region
        %s228 = ssub.s32 %s19, 1
        %s229 = smul.u32 4, %s24
        %p230 = scmp.lt.s32.totalorder %s229, 7
        %s231 = scalar_select %p230, %s229, 7
        %s232 = smul.addr %s231, 18
        %s233 = smul.addr %s232, 8
        %s234 = scalar_lea.vmem %s0, %s233
        %p235 = pneg %p45
        %p236 = pneg %p42
        %p237 = pneg %p66
        %p238 = pneg %p63
        %p239 = pneg %p87
        %p240 = pneg %p84
        %p241 = pneg %p108
        %p242 = pneg %p105
        %p243 = pneg %p129
        %p244 = pneg %p126
        %p245 = pneg %p155
        %p246 = pneg %p152
        %s247 = sand.u32 %s142, 1
        %s248 = scalar_lea.sflag [#allocation4], %s247
        %s249 = sand.u32 %s142, 1
        %s250 = smul.addr %s249, 64
        %s251 = scalar_lea.vmem [#allocation3], %s250
        %p252 = pneg %p181
        %p253 = pneg %p178
        %s254 = sand.u32 %s168, 1
        %s255 = scalar_lea.sflag [#allocation6], %s254
        %s256 = sand.u32 %s168, 1
        %s257 = smul.addr %s256, 2
        %s258 = scalar_lea.vmem [#allocation5], %s257
        %s259 = smul.u32 4, %s24
        %p260 = scmp.lt.s32.totalorder %s259, 7
        %s261 = scalar_select %p260, %s259, 7
        %s262 = smul.addr %s261, 18
        %s263 = smul.addr %s262, 8
        %s264 = scalar_lea.vmem %s0, %s263
        %s265 = smul.u32 4, %s24
        %v266 = vld [vmem:[%s2] sm:$0x1]
        %v267 = vld [vmem:[%s3] sm:$0x1]
        %v268 = vld [vmem:[%s264] sm:$0xff]
        %v269 = vld [vmem:[%s264 + $0x8] sm:$0x1]
        %v270 = vld [vmem:[%s264 + $0x10] sm:$0xff]
        %v271 = vld [vmem:[%s264 + $0x18] sm:$0x1]
        %v272 = vld [vmem:[%s264 + $0x20] sm:$0xff]
        %v273 = vld [vmem:[%s264 + $0x28] sm:$0x1]
        %v274 = vld [vmem:[%s264 + $0x30] sm:$0xff]
        %v275 = vld [vmem:[%s264 + $0x38] sm:$0x1]
        %v276 = vld [vmem:[%s264 + $0x40] sm:$0xff]
        %v277 = vld [vmem:[%s264 + $0x48] sm:$0x1]
        %v278 = vld [vmem:[%s264 + $0x50] sm:$0xff]
        %v279 = vld [vmem:[%s264 + $0x58] sm:$0x1]
        %v280 = vld [vmem:[%s264 + $0x60] sm:$0xff]
        %v281 = vld [vmem:[%s264 + $0x68] sm:$0x1]
        %v282 = vld [vmem:[%s264 + $0x70] sm:$0xff]
        %v283 = vld [vmem:[%s264 + $0x78] sm:$0x1]
        %v284 = vld [vmem:[%s264 + $0x80] sm:$0xff]
        %v285 = vld [vmem:[%s264 + $0x88] sm:$0x1]
        %v286 = vld [vmem:[%s264 + $0x90] sm:$0xff]
        %v287 = vld [vmem:[%s264 + $0x98] sm:$0x1]
        %v288 = vld [vmem:[%s264 + $0xa0] sm:$0xff]
        %v289 = vld [vmem:[%s264 + $0xa8] sm:$0x1]
        %v290 = vld [vmem:[%s264 + $0xb0] sm:$0xff]
        %v291 = vld [vmem:[%s264 + $0xb8] sm:$0x1]
        %v292 = vld [vmem:[%s264 + $0xc0] sm:$0xff]
        %v293 = vld [vmem:[%s264 + $0xc8] sm:$0x1]
        %v294 = vld [vmem:[%s264 + $0xd0] sm:$0xff]
        %v295 = vld [vmem:[%s264 + $0xd8] sm:$0x1]
        %v296 = vld [vmem:[%s264 + $0xe0] sm:$0xff]
        %v297 = vld [vmem:[%s264 + $0xe8] sm:$0x1]
        %v298 = vld [vmem:[%s264 + $0xf0] sm:$0xff]
        %v299 = vld [vmem:[%s264 + $0xf8] sm:$0x1]
        %v300 = vld [vmem:[%s264 + $0x100] sm:$0xff]
        %v301 = vld [vmem:[%s264 + $0x108] sm:$0x1]
        %v302 = vld [vmem:[%s264 + $0x110] sm:$0xff]
        %v303 = vld [vmem:[%s264 + $0x118] sm:$0x1]
        %v304 = vld [vmem:[%s264 + $0x120] sm:$0xff]
        %v305 = vld [vmem:[%s264 + $0x128] sm:$0x1]
        %v306 = vld [vmem:[%s264 + $0x130] sm:$0xff]
        %v307 = vld [vmem:[%s264 + $0x138] sm:$0x1]
        %v308 = vld [vmem:[%s264 + $0x140] sm:$0xff]
        %v309 = vld [vmem:[%s264 + $0x148] sm:$0x1]
        %v310 = vld [vmem:[%s264 + $0x150] sm:$0xff]
        %v311 = vld [vmem:[%s264 + $0x158] sm:$0x1]
        %v312 = vld [vmem:[%s264 + $0x160] sm:$0xff]
        %v313 = vld [vmem:[%s264 + $0x168] sm:$0x1]
        %v314 = vld [vmem:[%s264 + $0x170] sm:$0xff]
        %v315 = vld [vmem:[%s264 + $0x178] sm:$0x1]
        %v316 = vld [vmem:[%s264 + $0x180] sm:$0xff]
        %v317 = vld [vmem:[%s264 + $0x188] sm:$0x1]
        %v318 = vld [vmem:[%s264 + $0x190] sm:$0xff]
        %v319 = vld [vmem:[%s264 + $0x198] sm:$0x1]
        %v320 = vld [vmem:[%s264 + $0x1a0] sm:$0xff]
        %v321 = vld [vmem:[%s264 + $0x1a8] sm:$0x1]
        %v322 = vld [vmem:[%s264 + $0x1b0] sm:$0xff]
        %v323 = vld [vmem:[%s264 + $0x1b8] sm:$0x1]
        %v324 = vld [vmem:[%s264 + $0x1c0] sm:$0xff]
        %v325 = vld [vmem:[%s264 + $0x1c8] sm:$0x1]
        %v326 = vld [vmem:[%s264 + $0x1d0] sm:$0xff]
        %v327 = vld [vmem:[%s264 + $0x1d8] sm:$0x1]
        %v328 = vld [vmem:[%s264 + $0x1e0] sm:$0xff]
        %v329 = vld [vmem:[%s264 + $0x1e8] sm:$0x1]
        %v330 = vld [vmem:[%s264 + $0x1f0] sm:$0xff]
        %v331 = vld [vmem:[%s264 + $0x1f8] sm:$0x1]
        %v332 = vld [vmem:[%s264 + $0x200] sm:$0xff]
        %v333 = vld [vmem:[%s264 + $0x208] sm:$0x1]
        %v334 = vld [vmem:[%s264 + $0x210] sm:$0xff]
        %v335 = vld [vmem:[%s264 + $0x218] sm:$0x1]
        %v336 = vld [vmem:[%s264 + $0x220] sm:$0xff]
        %v337 = vld [vmem:[%s264 + $0x228] sm:$0x1]
        %v338 = vld [vmem:[%s264 + $0x230] sm:$0xff]
        %v339 = vld [vmem:[%s264 + $0x238] sm:$0x1]
        %v341 = vperm.slane %v266, 0
        %v343 = vmul.f32 %v268, %v341
        %v344 = vmul.f32 %v269, %v341
        %v345 = vmul.f32 %v270, %v341
        %v346 = vmul.f32 %v271, %v341
        %v347 = vmul.f32 %v272, %v341
        %v348 = vmul.f32 %v273, %v341
        %v349 = vmul.f32 %v274, %v341
        %v350 = vmul.f32 %v275, %v341
        %v351 = vmul.f32 %v276, %v341
        %v352 = vmul.f32 %v277, %v341
        %v353 = vmul.f32 %v278, %v341
        %v354 = vmul.f32 %v279, %v341
        %v355 = vmul.f32 %v280, %v341
        %v356 = vmul.f32 %v281, %v341
        %v357 = vmul.f32 %v282, %v341
        %v358 = vmul.f32 %v283, %v341
        %v359 = vmul.f32 %v284, %v341
        %v360 = vmul.f32 %v285, %v341
        %v361 = vmul.f32 %v286, %v341
        %v362 = vmul.f32 %v287, %v341
        %v363 = vmul.f32 %v288, %v341
        %v364 = vmul.f32 %v289, %v341
        %v365 = vmul.f32 %v290, %v341
        %v366 = vmul.f32 %v291, %v341
        %v367 = vmul.f32 %v292, %v341
        %v368 = vmul.f32 %v293, %v341
        %v369 = vmul.f32 %v294, %v341
        %v370 = vmul.f32 %v295, %v341
        %v371 = vmul.f32 %v296, %v341
        %v372 = vmul.f32 %v297, %v341
        %v373 = vmul.f32 %v298, %v341
        %v374 = vmul.f32 %v299, %v341
        %v375 = vmul.f32 %v300, %v341
        %v376 = vmul.f32 %v301, %v341
        %v377 = vmul.f32 %v302, %v341
        %v378 = vmul.f32 %v303, %v341
        %v379 = vmul.f32 %v304, %v341
        %v380 = vmul.f32 %v305, %v341
        %v381 = vmul.f32 %v306, %v341
        %v382 = vmul.f32 %v307, %v341
        %v383 = vmul.f32 %v308, %v341
        %v384 = vmul.f32 %v309, %v341
        %v385 = vmul.f32 %v310, %v341
        %v386 = vmul.f32 %v311, %v341
        %v387 = vmul.f32 %v312, %v341
        %v388 = vmul.f32 %v313, %v341
        %v389 = vmul.f32 %v314, %v341
        %v390 = vmul.f32 %v315, %v341
        %v391 = vmul.f32 %v316, %v341
        %v392 = vmul.f32 %v317, %v341
        %v393 = vmul.f32 %v318, %v341
        %v394 = vmul.f32 %v319, %v341
        %v395 = vmul.f32 %v320, %v341
        %v396 = vmul.f32 %v321, %v341
        %v397 = vmul.f32 %v322, %v341
        %v398 = vmul.f32 %v323, %v341
        %v399 = vmul.f32 %v324, %v341
        %v400 = vmul.f32 %v325, %v341
        %v401 = vmul.f32 %v326, %v341
        %v402 = vmul.f32 %v327, %v341
        %v403 = vmul.f32 %v328, %v341
        %v404 = vmul.f32 %v329, %v341
        %v405 = vmul.f32 %v330, %v341
        %v406 = vmul.f32 %v331, %v341
        %v407 = vmul.f32 %v332, %v341
        %v408 = vmul.f32 %v333, %v341
        %v409 = vmul.f32 %v334, %v341
        %v410 = vmul.f32 %v335, %v341
        %v411 = vmul.f32 %v336, %v341
        %v412 = vmul.f32 %v337, %v341
        %v413 = vmul.f32 %v338, %v341
        %v414 = vmul.f32 %v339, %v341
        %v416 = vperm.slane %v267, 0
        %v418 = vadd.f32 %v343, %v416
        %v419 = vadd.f32 %v344, %v416
        %v420 = vadd.f32 %v345, %v416
        %v421 = vadd.f32 %v346, %v416
        %v422 = vadd.f32 %v347, %v416
        %v423 = vadd.f32 %v348, %v416
        %v424 = vadd.f32 %v349, %v416
        %v425 = vadd.f32 %v350, %v416
        %v426 = vadd.f32 %v351, %v416
        %v427 = vadd.f32 %v352, %v416
        %v428 = vadd.f32 %v353, %v416
        %v429 = vadd.f32 %v354, %v416
        %v430 = vadd.f32 %v355, %v416
        %v431 = vadd.f32 %v356, %v416
        %v432 = vadd.f32 %v357, %v416
        %v433 = vadd.f32 %v358, %v416
        %v434 = vadd.f32 %v359, %v416
        %v435 = vadd.f32 %v360, %v416
        %v436 = vadd.f32 %v361, %v416
        %v437 = vadd.f32 %v362, %v416
        %v438 = vadd.f32 %v363, %v416
        %v439 = vadd.f32 %v364, %v416
        %v440 = vadd.f32 %v365, %v416
        %v441 = vadd.f32 %v366, %v416
        %v442 = vadd.f32 %v367, %v416
        %v443 = vadd.f32 %v368, %v416
        %v444 = vadd.f32 %v369, %v416
        %v445 = vadd.f32 %v370, %v416
        %v446 = vadd.f32 %v371, %v416
        %v447 = vadd.f32 %v372, %v416
        %v448 = vadd.f32 %v373, %v416
        %v449 = vadd.f32 %v374, %v416
        %v450 = vadd.f32 %v375, %v416
        %v451 = vadd.f32 %v376, %v416
        %v452 = vadd.f32 %v377, %v416
        %v453 = vadd.f32 %v378, %v416
        %v454 = vadd.f32 %v379, %v416
        %v455 = vadd.f32 %v380, %v416
        %v456 = vadd.f32 %v381, %v416
        %v457 = vadd.f32 %v382, %v416
        %v458 = vadd.f32 %v383, %v416
        %v459 = vadd.f32 %v384, %v416
        %v460 = vadd.f32 %v385, %v416
        %v461 = vadd.f32 %v386, %v416
        %v462 = vadd.f32 %v387, %v416
        %v463 = vadd.f32 %v388, %v416
        %v464 = vadd.f32 %v389, %v416
        %v465 = vadd.f32 %v390, %v416
        %v466 = vadd.f32 %v391, %v416
        %v467 = vadd.f32 %v392, %v416
        %v468 = vadd.f32 %v393, %v416
        %v469 = vadd.f32 %v394, %v416
        %v470 = vadd.f32 %v395, %v416
        %v471 = vadd.f32 %v396, %v416
        %v472 = vadd.f32 %v397, %v416
        %v473 = vadd.f32 %v398, %v416
        %v474 = vadd.f32 %v399, %v416
        %v475 = vadd.f32 %v400, %v416
        %v476 = vadd.f32 %v401, %v416
        %v477 = vadd.f32 %v402, %v416
        %v478 = vadd.f32 %v403, %v416
        %v479 = vadd.f32 %v404, %v416
        %v480 = vadd.f32 %v405, %v416
        %v481 = vadd.f32 %v406, %v416
        %v482 = vadd.f32 %v407, %v416
        %v483 = vadd.f32 %v408, %v416
        %v484 = vadd.f32 %v409, %v416
        %v485 = vadd.f32 %v410, %v416
        %v486 = vadd.f32 %v411, %v416
        %v487 = vadd.f32 %v412, %v416
        %v488 = vadd.f32 %v413, %v416
        %v489 = vadd.f32 %v414, %v416
        %v490 = vmax.f32 %v418, 0.0
        %v491 = vmax.f32 %v419, 0.0
        %v492 = vmax.f32 %v420, 0.0
        %v493 = vmax.f32 %v421, 0.0
        %v494 = vmax.f32 %v422, 0.0
        %v495 = vmax.f32 %v423, 0.0
        %v496 = vmax.f32 %v424, 0.0
        %v497 = vmax.f32 %v425, 0.0
        %v498 = vmax.f32 %v426, 0.0
        %v499 = vmax.f32 %v427, 0.0
        %v500 = vmax.f32 %v428, 0.0
        %v501 = vmax.f32 %v429, 0.0
        %v502 = vmax.f32 %v430, 0.0
        %v503 = vmax.f32 %v431, 0.0
        %v504 = vmax.f32 %v432, 0.0
        %v505 = vmax.f32 %v433, 0.0
        %v506 = vmax.f32 %v434, 0.0
        %v507 = vmax.f32 %v435, 0.0
        %v508 = vmax.f32 %v436, 0.0
        %v509 = vmax.f32 %v437, 0.0
        %v510 = vmax.f32 %v438, 0.0
        %v511 = vmax.f32 %v439, 0.0
        %v512 = vmax.f32 %v440, 0.0
        %v513 = vmax.f32 %v441, 0.0
        %v514 = vmax.f32 %v442, 0.0
        %v515 = vmax.f32 %v443, 0.0
        %v516 = vmax.f32 %v444, 0.0
        %v517 = vmax.f32 %v445, 0.0
        %v518 = vmax.f32 %v446, 0.0
        %v519 = vmax.f32 %v447, 0.0
        %v520 = vmax.f32 %v448, 0.0
        %v521 = vmax.f32 %v449, 0.0
        %v522 = vmax.f32 %v450, 0.0
        %v523 = vmax.f32 %v451, 0.0
        %v524 = vmax.f32 %v452, 0.0
        %v525 = vmax.f32 %v453, 0.0
        %v526 = vmax.f32 %v454, 0.0
        %v527 = vmax.f32 %v455, 0.0
        %v528 = vmax.f32 %v456, 0.0
        %v529 = vmax.f32 %v457, 0.0
        %v530 = vmax.f32 %v458, 0.0
        %v531 = vmax.f32 %v459, 0.0
        %v532 = vmax.f32 %v460, 0.0
        %v533 = vmax.f32 %v461, 0.0
        %v534 = vmax.f32 %v462, 0.0
        %v535 = vmax.f32 %v463, 0.0
        %v536 = vmax.f32 %v464, 0.0
        %v537 = vmax.f32 %v465, 0.0
        %v538 = vmax.f32 %v466, 0.0
        %v539 = vmax.f32 %v467, 0.0
        %v540 = vmax.f32 %v468, 0.0
        %v541 = vmax.f32 %v469, 0.0
        %v542 = vmax.f32 %v470, 0.0
        %v543 = vmax.f32 %v471, 0.0
        %v544 = vmax.f32 %v472, 0.0
        %v545 = vmax.f32 %v473, 0.0
        %v546 = vmax.f32 %v474, 0.0
        %v547 = vmax.f32 %v475, 0.0
        %v548 = vmax.f32 %v476, 0.0
        %v549 = vmax.f32 %v477, 0.0
        %v550 = vmax.f32 %v478, 0.0
        %v551 = vmax.f32 %v479, 0.0
        %v552 = vmax.f32 %v480, 0.0
        %v553 = vmax.f32 %v481, 0.0
        %v554 = vmax.f32 %v482, 0.0
        %v555 = vmax.f32 %v483, 0.0
        %v556 = vmax.f32 %v484, 0.0
        %v557 = vmax.f32 %v485, 0.0
        %v558 = vmax.f32 %v486, 0.0
        %v559 = vmax.f32 %v487, 0.0
        %v560 = vmax.f32 %v488, 0.0
        %v561 = vmax.f32 %v489, 0.0
        %v562 = vld [vmem:[%s1] sm:$0xff]
        %v563 = vld [vmem:[%s1 + $0x8] sm:$0x1]
        %v564 = vld [vmem:[%s1 + $0x10] sm:$0xff]
        %v565 = vld [vmem:[%s1 + $0x18] sm:$0x1]
        %v566 = vld [vmem:[%s1 + $0x20] sm:$0xff]
        %v567 = vld [vmem:[%s1 + $0x28] sm:$0x1]
        %v568 = vld [vmem:[%s1 + $0x30] sm:$0xff]
        %v569 = vld [vmem:[%s1 + $0x38] sm:$0x1]
        %v570 = vld [vmem:[%s1 + $0x40] sm:$0xff]
        %v571 = vld [vmem:[%s1 + $0x48] sm:$0x1]
        %v572 = vld [vmem:[%s1 + $0x50] sm:$0xff]
        %v573 = vld [vmem:[%s1 + $0x58] sm:$0x1]
        %v574 = vld [vmem:[%s1 + $0x60] sm:$0xff]
        %v575 = vld [vmem:[%s1 + $0x68] sm:$0x1]
        %v576 = vld [vmem:[%s1 + $0x70] sm:$0xff]
        %v577 = vld [vmem:[%s1 + $0x78] sm:$0x1]
        %v578 = vld [vmem:[%s1 + $0x80] sm:$0xff]
        %v579 = vld [vmem:[%s1 + $0x88] sm:$0x1]
        %v580 = vld [vmem:[%s1 + $0x90] sm:$0xff]
        %v581 = vld [vmem:[%s1 + $0x98] sm:$0x1]
        %v582 = vld [vmem:[%s1 + $0xa0] sm:$0xff]
        %v583 = vld [vmem:[%s1 + $0xa8] sm:$0x1]
        %v584 = vld [vmem:[%s1 + $0xb0] sm:$0xff]
        %v585 = vld [vmem:[%s1 + $0xb8] sm:$0x1]
        %v586 = vld [vmem:[%s1 + $0xc0] sm:$0xff]
        %v587 = vld [vmem:[%s1 + $0xc8] sm:$0x1]
        %v588 = vld [vmem:[%s1 + $0xd0] sm:$0xff]
        %v589 = vld [vmem:[%s1 + $0xd8] sm:$0x1]
        %v590 = vld [vmem:[%s1 + $0xe0] sm:$0xff]
        %v591 = vld [vmem:[%s1 + $0xe8] sm:$0x1]
        %v592 = vld [vmem:[%s1 + $0xf0] sm:$0xff]
        %v593 = vld [vmem:[%s1 + $0xf8] sm:$0x1]
        %v594 = vld [vmem:[%s1 + $0x100] sm:$0xff]
        %v595 = vld [vmem:[%s1 + $0x108] sm:$0x1]
        %v596 = vld [vmem:[%s1 + $0x110] sm:$0xff]
        %v597 = vld [vmem:[%s1 + $0x118] sm:$0x1]
        %v598 = vld [vmem:[%s1 + $0x120] sm:$0xff]
        %v599 = vld [vmem:[%s1 + $0x128] sm:$0x1]
        %v600 = vld [vmem:[%s1 + $0x130] sm:$0xff]
        %v601 = vld [vmem:[%s1 + $0x138] sm:$0x1]
        %v602 = vld [vmem:[%s1 + $0x140] sm:$0xff]
        %v603 = vld [vmem:[%s1 + $0x148] sm:$0x1]
        %v604 = vld [vmem:[%s1 + $0x150] sm:$0xff]
        %v605 = vld [vmem:[%s1 + $0x158] sm:$0x1]
        %v606 = vld [vmem:[%s1 + $0x160] sm:$0xff]
        %v607 = vld [vmem:[%s1 + $0x168] sm:$0x1]
        %v608 = vld [vmem:[%s1 + $0x170] sm:$0xff]
        %v609 = vld [vmem:[%s1 + $0x178] sm:$0x1]
        %v610 = vld [vmem:[%s1 + $0x180] sm:$0xff]
        %v611 = vld [vmem:[%s1 + $0x188] sm:$0x1]
        %v612 = vld [vmem:[%s1 + $0x190] sm:$0xff]
        %v613 = vld [vmem:[%s1 + $0x198] sm:$0x1]
        %v614 = vld [vmem:[%s1 + $0x1a0] sm:$0xff]
        %v615 = vld [vmem:[%s1 + $0x1a8] sm:$0x1]
        %v616 = vld [vmem:[%s1 + $0x1b0] sm:$0xff]
        %v617 = vld [vmem:[%s1 + $0x1b8] sm:$0x1]
        %v618 = vld [vmem:[%s1 + $0x1c0] sm:$0xff]
        %v619 = vld [vmem:[%s1 + $0x1c8] sm:$0x1]
        %v620 = vld [vmem:[%s1 + $0x1d0] sm:$0xff]
        %v621 = vld [vmem:[%s1 + $0x1d8] sm:$0x1]
        %v622 = vld [vmem:[%s1 + $0x1e0] sm:$0xff]
        %v623 = vld [vmem:[%s1 + $0x1e8] sm:$0x1]
        %v624 = vld [vmem:[%s1 + $0x1f0] sm:$0xff]
        %v625 = vld [vmem:[%s1 + $0x1f8] sm:$0x1]
        %v626 = vld [vmem:[%s1 + $0x200] sm:$0xff]
        %v627 = vld [vmem:[%s1 + $0x208] sm:$0x1]
        %v628 = vld [vmem:[%s1 + $0x210] sm:$0xff]
        %v629 = vld [vmem:[%s1 + $0x218] sm:$0x1]
        %v630 = vld [vmem:[%s1 + $0x220] sm:$0xff]
        %v631 = vld [vmem:[%s1 + $0x228] sm:$0x1]
        %v632 = vld [vmem:[%s1 + $0x230] sm:$0xff]
        %v633 = vld [vmem:[%s1 + $0x238] sm:$0x1]
        %635 = vset.pattern.permute.xlu0 0
        %636 = vperm.xlu0 %635, %v562
        %v637 = vpop.permute.xlu0 %636
        %640 = vset.pattern.permute.xlu0 0
        %641 = vperm.xlu0 %640, %v563
        %v642 = vpop.permute.xlu0 %641
        %645 = vset.pattern.permute.xlu0 0
        %646 = vperm.xlu0 %645, %v564
        %v647 = vpop.permute.xlu0 %646
        %650 = vset.pattern.permute.xlu0 0
        %651 = vperm.xlu0 %650, %v565
        %v652 = vpop.permute.xlu0 %651
        %655 = vset.pattern.permute.xlu0 0
        %656 = vperm.xlu0 %655, %v566
        %v657 = vpop.permute.xlu0 %656
        %660 = vset.pattern.permute.xlu0 0
        %661 = vperm.xlu0 %660, %v567
        %v662 = vpop.permute.xlu0 %661
        %665 = vset.pattern.permute.xlu0 0
        %666 = vperm.xlu0 %665, %v568
        %v667 = vpop.permute.xlu0 %666
        %670 = vset.pattern.permute.xlu0 0
        %671 = vperm.xlu0 %670, %v569
        %v672 = vpop.permute.xlu0 %671
        %675 = vset.pattern.permute.xlu0 0
        %676 = vperm.xlu0 %675, %v570
        %v677 = vpop.permute.xlu0 %676
        %680 = vset.pattern.permute.xlu0 0
        %681 = vperm.xlu0 %680, %v571
        %v682 = vpop.permute.xlu0 %681
        %685 = vset.pattern.permute.xlu0 0
        %686 = vperm.xlu0 %685, %v572
        %v687 = vpop.permute.xlu0 %686
        %690 = vset.pattern.permute.xlu0 0
        %691 = vperm.xlu0 %690, %v573
        %v692 = vpop.permute.xlu0 %691
        %695 = vset.pattern.permute.xlu0 0
        %696 = vperm.xlu0 %695, %v574
        %v697 = vpop.permute.xlu0 %696
        %700 = vset.pattern.permute.xlu0 0
        %701 = vperm.xlu0 %700, %v575
        %v702 = vpop.permute.xlu0 %701
        %705 = vset.pattern.permute.xlu0 0
        %706 = vperm.xlu0 %705, %v576
        %v707 = vpop.permute.xlu0 %706
        %710 = vset.pattern.permute.xlu0 0
        %711 = vperm.xlu0 %710, %v577
        %v712 = vpop.permute.xlu0 %711
        %715 = vset.pattern.permute.xlu0 0
        %716 = vperm.xlu0 %715, %v578
        %v717 = vpop.permute.xlu0 %716
        %720 = vset.pattern.permute.xlu0 0
        %721 = vperm.xlu0 %720, %v579
        %v722 = vpop.permute.xlu0 %721
        %725 = vset.pattern.permute.xlu0 0
        %726 = vperm.xlu0 %725, %v580
        %v727 = vpop.permute.xlu0 %726
        %730 = vset.pattern.permute.xlu0 0
        %731 = vperm.xlu0 %730, %v581
        %v732 = vpop.permute.xlu0 %731
        %735 = vset.pattern.permute.xlu0 0
        %736 = vperm.xlu0 %735, %v582
        %v737 = vpop.permute.xlu0 %736
        %740 = vset.pattern.permute.xlu0 0
        %741 = vperm.xlu0 %740, %v583
        %v742 = vpop.permute.xlu0 %741
        %745 = vset.pattern.permute.xlu0 0
        %746 = vperm.xlu0 %745, %v584
        %v747 = vpop.permute.xlu0 %746
        %750 = vset.pattern.permute.xlu0 0
        %751 = vperm.xlu0 %750, %v585
        %v752 = vpop.permute.xlu0 %751
        %755 = vset.pattern.permute.xlu0 0
        %756 = vperm.xlu0 %755, %v586
        %v757 = vpop.permute.xlu0 %756
        %760 = vset.pattern.permute.xlu0 0
        %761 = vperm.xlu0 %760, %v587
        %v762 = vpop.permute.xlu0 %761
        %765 = vset.pattern.permute.xlu0 0
        %766 = vperm.xlu0 %765, %v588
        %v767 = vpop.permute.xlu0 %766
        %770 = vset.pattern.permute.xlu0 0
        %771 = vperm.xlu0 %770, %v589
        %v772 = vpop.permute.xlu0 %771
        %775 = vset.pattern.permute.xlu0 0
        %776 = vperm.xlu0 %775, %v590
        %v777 = vpop.permute.xlu0 %776
        %780 = vset.pattern.permute.xlu0 0
        %781 = vperm.xlu0 %780, %v591
        %v782 = vpop.permute.xlu0 %781
        %785 = vset.pattern.permute.xlu0 0
        %786 = vperm.xlu0 %785, %v592
        %v787 = vpop.permute.xlu0 %786
        %790 = vset.pattern.permute.xlu0 0
        %791 = vperm.xlu0 %790, %v593
        %v792 = vpop.permute.xlu0 %791
        %795 = vset.pattern.permute.xlu0 0
        %796 = vperm.xlu0 %795, %v594
        %v797 = vpop.permute.xlu0 %796
        %800 = vset.pattern.permute.xlu0 0
        %801 = vperm.xlu0 %800, %v595
        %v802 = vpop.permute.xlu0 %801
        %805 = vset.pattern.permute.xlu0 0
        %806 = vperm.xlu0 %805, %v596
        %v807 = vpop.permute.xlu0 %806
        %810 = vset.pattern.permute.xlu0 0
        %811 = vperm.xlu0 %810, %v597
        %v812 = vpop.permute.xlu0 %811
        %815 = vset.pattern.permute.xlu0 0
        %816 = vperm.xlu0 %815, %v598
        %v817 = vpop.permute.xlu0 %816
        %820 = vset.pattern.permute.xlu0 0
        %821 = vperm.xlu0 %820, %v599
        %v822 = vpop.permute.xlu0 %821
        %825 = vset.pattern.permute.xlu0 0
        %826 = vperm.xlu0 %825, %v600
        %v827 = vpop.permute.xlu0 %826
        %830 = vset.pattern.permute.xlu0 0
        %831 = vperm.xlu0 %830, %v601
        %v832 = vpop.permute.xlu0 %831
        %835 = vset.pattern.permute.xlu0 0
        %836 = vperm.xlu0 %835, %v602
        %v837 = vpop.permute.xlu0 %836
        %840 = vset.pattern.permute.xlu0 0
        %841 = vperm.xlu0 %840, %v603
        %v842 = vpop.permute.xlu0 %841
        %845 = vset.pattern.permute.xlu0 0
        %846 = vperm.xlu0 %845, %v604
        %v847 = vpop.permute.xlu0 %846
        %850 = vset.pattern.permute.xlu0 0
        %851 = vperm.xlu0 %850, %v605
        %v852 = vpop.permute.xlu0 %851
        %855 = vset.pattern.permute.xlu0 0
        %856 = vperm.xlu0 %855, %v606
        %v857 = vpop.permute.xlu0 %856
        %860 = vset.pattern.permute.xlu0 0
        %861 = vperm.xlu0 %860, %v607
        %v862 = vpop.permute.xlu0 %861
        %865 = vset.pattern.permute.xlu0 0
        %866 = vperm.xlu0 %865, %v608
        %v867 = vpop.permute.xlu0 %866
        %870 = vset.pattern.permute.xlu0 0
        %871 = vperm.xlu0 %870, %v609
        %v872 = vpop.permute.xlu0 %871
        %875 = vset.pattern.permute.xlu0 0
        %876 = vperm.xlu0 %875, %v610
        %v877 = vpop.permute.xlu0 %876
        %880 = vset.pattern.permute.xlu0 0
        %881 = vperm.xlu0 %880, %v611
        %v882 = vpop.permute.xlu0 %881
        %885 = vset.pattern.permute.xlu0 0
        %886 = vperm.xlu0 %885, %v612
        %v887 = vpop.permute.xlu0 %886
        %890 = vset.pattern.permute.xlu0 0
        %891 = vperm.xlu0 %890, %v613
        %v892 = vpop.permute.xlu0 %891
        %895 = vset.pattern.permute.xlu0 0
        %896 = vperm.xlu0 %895, %v614
        %v897 = vpop.permute.xlu0 %896
        %900 = vset.pattern.permute.xlu0 0
        %901 = vperm.xlu0 %900, %v615
        %v902 = vpop.permute.xlu0 %901
        %905 = vset.pattern.permute.xlu0 0
        %906 = vperm.xlu0 %905, %v616
        %v907 = vpop.permute.xlu0 %906
        %910 = vset.pattern.permute.xlu0 0
        %911 = vperm.xlu0 %910, %v617
        %v912 = vpop.permute.xlu0 %911
        %915 = vset.pattern.permute.xlu0 0
        %916 = vperm.xlu0 %915, %v618
        %v917 = vpop.permute.xlu0 %916
        %920 = vset.pattern.permute.xlu0 0
        %921 = vperm.xlu0 %920, %v619
        %v922 = vpop.permute.xlu0 %921
        %925 = vset.pattern.permute.xlu0 0
        %926 = vperm.xlu0 %925, %v620
        %v927 = vpop.permute.xlu0 %926
        %930 = vset.pattern.permute.xlu0 0
        %931 = vperm.xlu0 %930, %v621
        %v932 = vpop.permute.xlu0 %931
        %935 = vset.pattern.permute.xlu0 0
        %936 = vperm.xlu0 %935, %v622
        %v937 = vpop.permute.xlu0 %936
        %940 = vset.pattern.permute.xlu0 0
        %941 = vperm.xlu0 %940, %v623
        %v942 = vpop.permute.xlu0 %941
        %945 = vset.pattern.permute.xlu0 0
        %946 = vperm.xlu0 %945, %v624
        %v947 = vpop.permute.xlu0 %946
        %950 = vset.pattern.permute.xlu0 0
        %951 = vperm.xlu0 %950, %v625
        %v952 = vpop.permute.xlu0 %951
        %955 = vset.pattern.permute.xlu0 0
        %956 = vperm.xlu0 %955, %v626
        %v957 = vpop.permute.xlu0 %956
        %960 = vset.pattern.permute.xlu0 0
        %961 = vperm.xlu0 %960, %v627
        %v962 = vpop.permute.xlu0 %961
        %965 = vset.pattern.permute.xlu0 0
        %966 = vperm.xlu0 %965, %v628
        %v967 = vpop.permute.xlu0 %966
        %970 = vset.pattern.permute.xlu0 0
        %971 = vperm.xlu0 %970, %v629
        %v972 = vpop.permute.xlu0 %971
        %975 = vset.pattern.permute.xlu0 0
        %976 = vperm.xlu0 %975, %v630
        %v977 = vpop.permute.xlu0 %976
        %980 = vset.pattern.permute.xlu0 0
        %981 = vperm.xlu0 %980, %v631
        %v982 = vpop.permute.xlu0 %981
        %985 = vset.pattern.permute.xlu0 0
        %986 = vperm.xlu0 %985, %v632
        %v987 = vpop.permute.xlu0 %986
        %990 = vset.pattern.permute.xlu0 0
        %991 = vperm.xlu0 %990, %v633
        %v992 = vpop.permute.xlu0 %991
        %v994 = vmul.f32 %v490, %v637
        %v995 = vmul.f32 %v491, %v642
        %v996 = vmul.f32 %v492, %v647
        %v997 = vmul.f32 %v493, %v652
        %v998 = vmul.f32 %v494, %v657
        %v999 = vmul.f32 %v495, %v662
        %v1000 = vmul.f32 %v496, %v667
        %v1001 = vmul.f32 %v497, %v672
        %v1002 = vmul.f32 %v498, %v677
        %v1003 = vmul.f32 %v499, %v682
        %v1004 = vmul.f32 %v500, %v687
        %v1005 = vmul.f32 %v501, %v692
        %v1006 = vmul.f32 %v502, %v697
        %v1007 = vmul.f32 %v503, %v702
        %v1008 = vmul.f32 %v504, %v707
        %v1009 = vmul.f32 %v505, %v712
        %v1010 = vmul.f32 %v506, %v717
        %v1011 = vmul.f32 %v507, %v722
        %v1012 = vmul.f32 %v508, %v727
        %v1013 = vmul.f32 %v509, %v732
        %v1014 = vmul.f32 %v510, %v737
        %v1015 = vmul.f32 %v511, %v742
        %v1016 = vmul.f32 %v512, %v747
        %v1017 = vmul.f32 %v513, %v752
        %v1018 = vmul.f32 %v514, %v757
        %v1019 = vmul.f32 %v515, %v762
        %v1020 = vmul.f32 %v516, %v767
        %v1021 = vmul.f32 %v517, %v772
        %v1022 = vmul.f32 %v518, %v777
        %v1023 = vmul.f32 %v519, %v782
        %v1024 = vmul.f32 %v520, %v787
        %v1025 = vmul.f32 %v521, %v792
        %v1026 = vmul.f32 %v522, %v797
        %v1027 = vmul.f32 %v523, %v802
        %v1028 = vmul.f32 %v524, %v807
        %v1029 = vmul.f32 %v525, %v812
        %v1030 = vmul.f32 %v526, %v817
        %v1031 = vmul.f32 %v527, %v822
        %v1032 = vmul.f32 %v528, %v827
        %v1033 = vmul.f32 %v529, %v832
        %v1034 = vmul.f32 %v530, %v837
        %v1035 = vmul.f32 %v531, %v842
        %v1036 = vmul.f32 %v532, %v847
        %v1037 = vmul.f32 %v533, %v852
        %v1038 = vmul.f32 %v534, %v857
        %v1039 = vmul.f32 %v535, %v862
        %v1040 = vmul.f32 %v536, %v867
        %v1041 = vmul.f32 %v537, %v872
        %v1042 = vmul.f32 %v538, %v877
        %v1043 = vmul.f32 %v539, %v882
        %v1044 = vmul.f32 %v540, %v887
        %v1045 = vmul.f32 %v541, %v892
        %v1046 = vmul.f32 %v542, %v897
        %v1047 = vmul.f32 %v543, %v902
        %v1048 = vmul.f32 %v544, %v907
        %v1049 = vmul.f32 %v545, %v912
        %v1050 = vmul.f32 %v546, %v917
        %v1051 = vmul.f32 %v547, %v922
        %v1052 = vmul.f32 %v548, %v927
        %v1053 = vmul.f32 %v549, %v932
        %v1054 = vmul.f32 %v550, %v937
        %v1055 = vmul.f32 %v551, %v942
        %v1056 = vmul.f32 %v552, %v947
        %v1057 = vmul.f32 %v553, %v952
        %v1058 = vmul.f32 %v554, %v957
        %v1059 = vmul.f32 %v555, %v962
        %v1060 = vmul.f32 %v556, %v967
        %v1061 = vmul.f32 %v557, %v972
        %v1062 = vmul.f32 %v558, %v977
        %v1063 = vmul.f32 %v559, %v982
        %v1064 = vmul.f32 %v560, %v987
        %v1065 = vmul.f32 %v561, %v992
        %v1066 = vpack.c.bf16 %v994, %v994
        %v1067 = vpack.c.bf16 %v995, %v995
        %v1068 = vpack.c.bf16 %v996, %v996
        %v1069 = vpack.c.bf16 %v997, %v997
        %v1070 = vpack.c.bf16 %v998, %v998
        %v1071 = vpack.c.bf16 %v999, %v999
        %v1072 = vpack.c.bf16 %v1000, %v1000
        %v1073 = vpack.c.bf16 %v1001, %v1001
        %v1074 = vpack.c.bf16 %v1002, %v1002
        %v1075 = vpack.c.bf16 %v1003, %v1003
        %v1076 = vpack.c.bf16 %v1004, %v1004
        %v1077 = vpack.c.bf16 %v1005, %v1005
        %v1078 = vpack.c.bf16 %v1006, %v1006
        %v1079 = vpack.c.bf16 %v1007, %v1007
        %v1080 = vpack.c.bf16 %v1008, %v1008
        %v1081 = vpack.c.bf16 %v1009, %v1009
        %v1082 = vpack.c.bf16 %v1010, %v1010
        %v1083 = vpack.c.bf16 %v1011, %v1011
        %v1084 = vpack.c.bf16 %v1012, %v1012
        %v1085 = vpack.c.bf16 %v1013, %v1013
        %v1086 = vpack.c.bf16 %v1014, %v1014
        %v1087 = vpack.c.bf16 %v1015, %v1015
        %v1088 = vpack.c.bf16 %v1016, %v1016
        %v1089 = vpack.c.bf16 %v1017, %v1017
        %v1090 = vpack.c.bf16 %v1018, %v1018
        %v1091 = vpack.c.bf16 %v1019, %v1019
        %v1092 = vpack.c.bf16 %v1020, %v1020
        %v1093 = vpack.c.bf16 %v1021, %v1021
        %v1094 = vpack.c.bf16 %v1022, %v1022
        %v1095 = vpack.c.bf16 %v1023, %v1023
        %v1096 = vpack.c.bf16 %v1024, %v1024
        %v1097 = vpack.c.bf16 %v1025, %v1025
        %v1098 = vpack.c.bf16 %v1026, %v1026
        %v1099 = vpack.c.bf16 %v1027, %v1027
        %v1100 = vpack.c.bf16 %v1028, %v1028
        %v1101 = vpack.c.bf16 %v1029, %v1029
        %v1102 = vpack.c.bf16 %v1030, %v1030
        %v1103 = vpack.c.bf16 %v1031, %v1031
        %v1104 = vpack.c.bf16 %v1032, %v1032
        %v1105 = vpack.c.bf16 %v1033, %v1033
        %v1106 = vpack.c.bf16 %v1034, %v1034
        %v1107 = vpack.c.bf16 %v1035, %v1035
        %v1108 = vpack.c.bf16 %v1036, %v1036
        %v1109 = vpack.c.bf16 %v1037, %v1037
        %v1110 = vpack.c.bf16 %v1038, %v1038
        %v1111 = vpack.c.bf16 %v1039, %v1039
        %v1112 = vpack.c.bf16 %v1040, %v1040
        %v1113 = vpack.c.bf16 %v1041, %v1041
        %v1114 = vpack.c.bf16 %v1042, %v1042
        %v1115 = vpack.c.bf16 %v1043, %v1043
        %v1116 = vpack.c.bf16 %v1044, %v1044
        %v1117 = vpack.c.bf16 %v1045, %v1045
        %v1118 = vpack.c.bf16 %v1046, %v1046
        %v1119 = vpack.c.bf16 %v1047, %v1047
        %v1120 = vpack.c.bf16 %v1048, %v1048
        %v1121 = vpack.c.bf16 %v1049, %v1049
        %v1122 = vpack.c.bf16 %v1050, %v1050
        %v1123 = vpack.c.bf16 %v1051, %v1051
        %v1124 = vpack.c.bf16 %v1052, %v1052
        %v1125 = vpack.c.bf16 %v1053, %v1053
        %v1126 = vpack.c.bf16 %v1054, %v1054
        %v1127 = vpack.c.bf16 %v1055, %v1055
        %v1128 = vpack.c.bf16 %v1056, %v1056
        %v1129 = vpack.c.bf16 %v1057, %v1057
        %v1130 = vpack.c.bf16 %v1058, %v1058
        %v1131 = vpack.c.bf16 %v1059, %v1059
        %v1132 = vpack.c.bf16 %v1060, %v1060
        %v1133 = vpack.c.bf16 %v1061, %v1061
        %v1134 = vpack.c.bf16 %v1062, %v1062
        %v1135 = vpack.c.bf16 %v1063, %v1063
        %v1136 = vpack.c.bf16 %v1064, %v1064
        %v1137 = vpack.c.bf16 %v1065, %v1065
        %1138 = vst [vmem:[#allocation2] sm:$0xf] %v1066
        %vm1139 = vcmask 1040384
        %vm1140 = vsmask.f32 256
        %vm1141 = vmand %vm1139, %vm1140
        %v1142 = vld [vmem:[#allocation2 + $0x4] sm:$0x1]
        %v1143 = vsel %vm1141, %v1067, %v1142
        %1144 = vst [vmem:[#allocation2 + $0x4] sm:$0x1] %v1143
        %1145 = vst [vmem:[#allocation2 + $0x8] sm:$0xf] %v1068
        %v1146 = vld [vmem:[#allocation2 + $0xc] sm:$0x1]
        %v1147 = vsel %vm1141, %v1069, %v1146
        %1148 = vst [vmem:[#allocation2 + $0xc] sm:$0x1] %v1147
        %1149 = vst [vmem:[#allocation2 + $0x10] sm:$0xf] %v1070
        %v1150 = vld [vmem:[#allocation2 + $0x14] sm:$0x1]
        %v1151 = vsel %vm1141, %v1071, %v1150
        %1152 = vst [vmem:[#allocation2 + $0x14] sm:$0x1] %v1151
        %1153 = vst [vmem:[#allocation2 + $0x18] sm:$0xf] %v1072
        %v1154 = vld [vmem:[#allocation2 + $0x1c] sm:$0x1]
        %v1155 = vsel %vm1141, %v1073, %v1154
        %1156 = vst [vmem:[#allocation2 + $0x1c] sm:$0x1] %v1155
        %1157 = vst [vmem:[#allocation2 + $0x20] sm:$0xf] %v1074
        %v1158 = vld [vmem:[#allocation2 + $0x24] sm:$0x1]
        %v1159 = vsel %vm1141, %v1075, %v1158
        %1160 = vst [vmem:[#allocation2 + $0x24] sm:$0x1] %v1159
        %1161 = vst [vmem:[#allocation2 + $0x28] sm:$0xf] %v1076
        %v1162 = vld [vmem:[#allocation2 + $0x2c] sm:$0x1]
        %v1163 = vsel %vm1141, %v1077, %v1162
        %1164 = vst [vmem:[#allocation2 + $0x2c] sm:$0x1] %v1163
        %1165 = vst [vmem:[#allocation2 + $0x30] sm:$0xf] %v1078
        %v1166 = vld [vmem:[#allocation2 + $0x34] sm:$0x1]
        %v1167 = vsel %vm1141, %v1079, %v1166
        %1168 = vst [vmem:[#allocation2 + $0x34] sm:$0x1] %v1167
        %1169 = vst [vmem:[#allocation2 + $0x38] sm:$0xf] %v1080
        %v1170 = vld [vmem:[#allocation2 + $0x3c] sm:$0x1]
        %v1171 = vsel %vm1141, %v1081, %v1170
        %1172 = vst [vmem:[#allocation2 + $0x3c] sm:$0x1] %v1171
        %1173 = vst [vmem:[#allocation2 + $0x40] sm:$0xf] %v1082
        %v1174 = vld [vmem:[#allocation2 + $0x44] sm:$0x1]
        %v1175 = vsel %vm1141, %v1083, %v1174
        %1176 = vst [vmem:[#allocation2 + $0x44] sm:$0x1] %v1175
        %1177 = vst [vmem:[#allocation2 + $0x48] sm:$0xf] %v1084
        %v1178 = vld [vmem:[#allocation2 + $0x4c] sm:$0x1]
        %v1179 = vsel %vm1141, %v1085, %v1178
        %1180 = vst [vmem:[#allocation2 + $0x4c] sm:$0x1] %v1179
        %1181 = vst [vmem:[#allocation2 + $0x50] sm:$0xf] %v1086
        %v1182 = vld [vmem:[#allocation2 + $0x54] sm:$0x1]
        %v1183 = vsel %vm1141, %v1087, %v1182
        %1184 = vst [vmem:[#allocation2 + $0x54] sm:$0x1] %v1183
        %1185 = vst [vmem:[#allocation2 + $0x58] sm:$0xf] %v1088
        %v1186 = vld [vmem:[#allocation2 + $0x5c] sm:$0x1]
        %v1187 = vsel %vm1141, %v1089, %v1186
        %1188 = vst [vmem:[#allocation2 + $0x5c] sm:$0x1] %v1187
        %1189 = vst [vmem:[#allocation2 + $0x60] sm:$0xf] %v1090
        %v1190 = vld [vmem:[#allocation2 + $0x64] sm:$0x1]
        %v1191 = vsel %vm1141, %v1091, %v1190
        %1192 = vst [vmem:[#allocation2 + $0x64] sm:$0x1] %v1191
        %1193 = vst [vmem:[#allocation2 + $0x68] sm:$0xf] %v1092
        %v1194 = vld [vmem:[#allocation2 + $0x6c] sm:$0x1]
        %v1195 = vsel %vm1141, %v1093, %v1194
        %1196 = vst [vmem:[#allocation2 + $0x6c] sm:$0x1] %v1195
        %1197 = vst [vmem:[#allocation2 + $0x70] sm:$0xf] %v1094
        %v1198 = vld [vmem:[#allocation2 + $0x74] sm:$0x1]
        %v1199 = vsel %vm1141, %v1095, %v1198
        %1200 = vst [vmem:[#allocation2 + $0x74] sm:$0x1] %v1199
        %1201 = vst [vmem:[#allocation2 + $0x78] sm:$0xf] %v1096
        %v1202 = vld [vmem:[#allocation2 + $0x7c] sm:$0x1]
        %v1203 = vsel %vm1141, %v1097, %v1202
        %1204 = vst [vmem:[#allocation2 + $0x7c] sm:$0x1] %v1203
        %1205 = vst [vmem:[#allocation2 + $0x80] sm:$0xf] %v1098
        %v1206 = vld [vmem:[#allocation2 + $0x84] sm:$0x1]
        %v1207 = vsel %vm1141, %v1099, %v1206
        %1208 = vst [vmem:[#allocation2 + $0x84] sm:$0x1] %v1207
        %1209 = vst [vmem:[#allocation2 + $0x88] sm:$0xf] %v1100
        %v1210 = vld [vmem:[#allocation2 + $0x8c] sm:$0x1]
        %v1211 = vsel %vm1141, %v1101, %v1210
        %1212 = vst [vmem:[#allocation2 + $0x8c] sm:$0x1] %v1211
        %1213 = vst [vmem:[#allocation2 + $0x90] sm:$0xf] %v1102
        %v1214 = vld [vmem:[#allocation2 + $0x94] sm:$0x1]
        %v1215 = vsel %vm1141, %v1103, %v1214
        %1216 = vst [vmem:[#allocation2 + $0x94] sm:$0x1] %v1215
        %1217 = vst [vmem:[#allocation2 + $0x98] sm:$0xf] %v1104
        %v1218 = vld [vmem:[#allocation2 + $0x9c] sm:$0x1]
        %v1219 = vsel %vm1141, %v1105, %v1218
        %1220 = vst [vmem:[#allocation2 + $0x9c] sm:$0x1] %v1219
        %1221 = vst [vmem:[#allocation2 + $0xa0] sm:$0xf] %v1106
        %v1222 = vld [vmem:[#allocation2 + $0xa4] sm:$0x1]
        %v1223 = vsel %vm1141, %v1107, %v1222
        %1224 = vst [vmem:[#allocation2 + $0xa4] sm:$0x1] %v1223
        %1225 = vst [vmem:[#allocation2 + $0xa8] sm:$0xf] %v1108
        %v1226 = vld [vmem:[#allocation2 + $0xac] sm:$0x1]
        %v1227 = vsel %vm1141, %v1109, %v1226
        %1228 = vst [vmem:[#allocation2 + $0xac] sm:$0x1] %v1227
        %1229 = vst [vmem:[#allocation2 + $0xb0] sm:$0xf] %v1110
        %v1230 = vld [vmem:[#allocation2 + $0xb4] sm:$0x1]
        %v1231 = vsel %vm1141, %v1111, %v1230
        %1232 = vst [vmem:[#allocation2 + $0xb4] sm:$0x1] %v1231
        %1233 = vst [vmem:[#allocation2 + $0xb8] sm:$0xf] %v1112
        %v1234 = vld [vmem:[#allocation2 + $0xbc] sm:$0x1]
        %v1235 = vsel %vm1141, %v1113, %v1234
        %1236 = vst [vmem:[#allocation2 + $0xbc] sm:$0x1] %v1235
        %1237 = vst [vmem:[#allocation2 + $0xc0] sm:$0xf] %v1114
        %v1238 = vld [vmem:[#allocation2 + $0xc4] sm:$0x1]
        %v1239 = vsel %vm1141, %v1115, %v1238
        %1240 = vst [vmem:[#allocation2 + $0xc4] sm:$0x1] %v1239
        %1241 = vst [vmem:[#allocation2 + $0xc8] sm:$0xf] %v1116
        %v1242 = vld [vmem:[#allocation2 + $0xcc] sm:$0x1]
        %v1243 = vsel %vm1141, %v1117, %v1242
        %1244 = vst [vmem:[#allocation2 + $0xcc] sm:$0x1] %v1243
        %1245 = vst [vmem:[#allocation2 + $0xd0] sm:$0xf] %v1118
        %v1246 = vld [vmem:[#allocation2 + $0xd4] sm:$0x1]
        %v1247 = vsel %vm1141, %v1119, %v1246
        %1248 = vst [vmem:[#allocation2 + $0xd4] sm:$0x1] %v1247
        %1249 = vst [vmem:[#allocation2 + $0xd8] sm:$0xf] %v1120
        %v1250 = vld [vmem:[#allocation2 + $0xdc] sm:$0x1]
        %v1251 = vsel %vm1141, %v1121, %v1250
        %1252 = vst [vmem:[#allocation2 + $0xdc] sm:$0x1] %v1251
        %1253 = vst [vmem:[#allocation2 + $0xe0] sm:$0xf] %v1122
        %v1254 = vld [vmem:[#allocation2 + $0xe4] sm:$0x1]
        %v1255 = vsel %vm1141, %v1123, %v1254
        %1256 = vst [vmem:[#allocation2 + $0xe4] sm:$0x1] %v1255
        %1257 = vst [vmem:[#allocation2 + $0xe8] sm:$0xf] %v1124
        %v1258 = vld [vmem:[#allocation2 + $0xec] sm:$0x1]
        %v1259 = vsel %vm1141, %v1125, %v1258
        %1260 = vst [vmem:[#allocation2 + $0xec] sm:$0x1] %v1259
        %1261 = vst [vmem:[#allocation2 + $0xf0] sm:$0xf] %v1126
        %v1262 = vld [vmem:[#allocation2 + $0xf4] sm:$0x1]
        %v1263 = vsel %vm1141, %v1127, %v1262
        %1264 = vst [vmem:[#allocation2 + $0xf4] sm:$0x1] %v1263
        %1265 = vst [vmem:[#allocation2 + $0xf8] sm:$0xf] %v1128
        %v1266 = vld [vmem:[#allocation2 + $0xfc] sm:$0x1]
        %v1267 = vsel %vm1141, %v1129, %v1266
        %1268 = vst [vmem:[#allocation2 + $0xfc] sm:$0x1] %v1267
        %1269 = vst [vmem:[#allocation2 + $0x100] sm:$0xf] %v1130
        %v1270 = vld [vmem:[#allocation2 + $0x104] sm:$0x1]
        %v1271 = vsel %vm1141, %v1131, %v1270
        %1272 = vst [vmem:[#allocation2 + $0x104] sm:$0x1] %v1271
        %1273 = vst [vmem:[#allocation2 + $0x108] sm:$0xf] %v1132
        %v1274 = vld [vmem:[#allocation2 + $0x10c] sm:$0x1]
        %v1275 = vsel %vm1141, %v1133, %v1274
        %1276 = vst [vmem:[#allocation2 + $0x10c] sm:$0x1] %v1275
        %1277 = vst [vmem:[#allocation2 + $0x110] sm:$0xf] %v1134
        %v1278 = vld [vmem:[#allocation2 + $0x114] sm:$0x1]
        %v1279 = vsel %vm1141, %v1135, %v1278
        %1280 = vst [vmem:[#allocation2 + $0x114] sm:$0x1] %v1279
        %1281 = vst [vmem:[#allocation2 + $0x118] sm:$0xf] %v1136
        %v1282 = vld [vmem:[#allocation2 + $0x11c] sm:$0x1]
        %v1283 = vsel %vm1141, %v1137, %v1282
        %1284 = vst [vmem:[#allocation2 + $0x11c] sm:$0x1] %v1283
        %v1285 = vld [vmem:[#allocation2] sm:$0xf]
        %v1286 = vld [vmem:[#allocation2 + $0x8] sm:$0xf]
        %v1287 = vld [vmem:[#allocation2 + $0x10] sm:$0xf]
        %v1288 = vld [vmem:[#allocation2 + $0x18] sm:$0xf]
        %v1289 = vld [vmem:[#allocation2 + $0x20] sm:$0xf]
        %v1290 = vld [vmem:[#allocation2 + $0x28] sm:$0xf]
        %v1291 = vld [vmem:[#allocation2 + $0x30] sm:$0xf]
        %v1292 = vld [vmem:[#allocation2 + $0x38] sm:$0xf]
        %v1293 = vld [vmem:[%s4] sm:$0xf]
        %v1294 = vld [vmem:[%s4 + $0x4] sm:$0xf]
        %v1295 = vld [vmem:[%s4 + $0x8] sm:$0xf]
        %v1296 = vld [vmem:[%s4 + $0xc] sm:$0xf]
        %v1297 = vld [vmem:[%s4 + $0x10] sm:$0xf]
        %v1298 = vld [vmem:[%s4 + $0x14] sm:$0xf]
        %v1299 = vld [vmem:[%s4 + $0x18] sm:$0xf]
        %v1300 = vld [vmem:[%s4 + $0x1c] sm:$0xf]
        %v1301 = vld [vmem:[%s4 + $0x20] sm:$0xf]
        %v1302 = vld [vmem:[%s4 + $0x24] sm:$0xf]
        %v1303 = vld [vmem:[%s4 + $0x28] sm:$0xf]
        %v1304 = vld [vmem:[%s4 + $0x2c] sm:$0xf]
        %v1305 = vld [vmem:[%s4 + $0x30] sm:$0xf]
        %v1306 = vld [vmem:[%s4 + $0x34] sm:$0xf]
        %v1307 = vld [vmem:[%s4 + $0x38] sm:$0xf]
        %v1308 = vld [vmem:[%s4 + $0x3c] sm:$0xf]
        %s1309 = scalar_lea.vmem [#allocation2], 72
        %v1310 = vld [vmem:[%s1309] sm:$0xf]
        %v1311 = vld [vmem:[%s1309 + $0x8] sm:$0xf]
        %v1312 = vld [vmem:[%s1309 + $0x10] sm:$0xf]
        %v1313 = vld [vmem:[%s1309 + $0x18] sm:$0xf]
        %v1314 = vld [vmem:[%s1309 + $0x20] sm:$0xf]
        %v1315 = vld [vmem:[%s1309 + $0x28] sm:$0xf]
        %v1316 = vld [vmem:[%s1309 + $0x30] sm:$0xf]
        %v1317 = vld [vmem:[%s1309 + $0x38] sm:$0xf]
        %s1318 = scalar_lea.vmem %s4, 64
        %v1319 = vld [vmem:[%s1318] sm:$0xf]
        %v1320 = vld [vmem:[%s1318 + $0x4] sm:$0xf]
        %v1321 = vld [vmem:[%s1318 + $0x8] sm:$0xf]
        %v1322 = vld [vmem:[%s1318 + $0xc] sm:$0xf]
        %v1323 = vld [vmem:[%s1318 + $0x10] sm:$0xf]
        %v1324 = vld [vmem:[%s1318 + $0x14] sm:$0xf]
        %v1325 = vld [vmem:[%s1318 + $0x18] sm:$0xf]
        %v1326 = vld [vmem:[%s1318 + $0x1c] sm:$0xf]
        %v1327 = vld [vmem:[%s1318 + $0x20] sm:$0xf]
        %v1328 = vld [vmem:[%s1318 + $0x24] sm:$0xf]
        %v1329 = vld [vmem:[%s1318 + $0x28] sm:$0xf]
        %v1330 = vld [vmem:[%s1318 + $0x2c] sm:$0xf]
        %v1331 = vld [vmem:[%s1318 + $0x30] sm:$0xf]
        %v1332 = vld [vmem:[%s1318 + $0x34] sm:$0xf]
        %v1333 = vld [vmem:[%s1318 + $0x38] sm:$0xf]
        %v1334 = vld [vmem:[%s1318 + $0x3c] sm:$0xf]
        %v1343 = vunpack.c.l.b16 %v1310
        %v1344 = vunpack.c.l.b16 %v1311
        %v1345 = vunpack.c.l.b16 %v1312
        %v1346 = vunpack.c.l.b16 %v1313
        %v1347 = vunpack.c.l.b16 %v1314
        %v1348 = vunpack.c.l.b16 %v1315
        %v1349 = vunpack.c.l.b16 %v1316
        %v1350 = vunpack.c.l.b16 %v1317
        %v1351 = vpack.c.b16 %v1344, %v1343
        %v1352 = vpack.c.b16 %v1346, %v1345
        %v1353 = vpack.c.b16 %v1348, %v1347
        %v1354 = vpack.c.b16 %v1350, %v1349
        %v1375 = vunpack.c.l.b16 %v1319
        %v1376 = vunpack.c.l.b16 %v1320
        %v1377 = vunpack.c.l.b16 %v1321
        %v1378 = vunpack.c.l.b16 %v1322
        %v1379 = vunpack.c.l.b16 %v1323
        %v1380 = vunpack.c.l.b16 %v1324
        %v1381 = vunpack.c.l.b16 %v1325
        %v1382 = vunpack.c.l.b16 %v1326
        %v1383 = vunpack.c.l.b16 %v1327
        %v1384 = vunpack.c.l.b16 %v1328
        %v1385 = vunpack.c.l.b16 %v1329
        %v1386 = vunpack.c.l.b16 %v1330
        %v1387 = vunpack.c.l.b16 %v1331
        %v1388 = vunpack.c.l.b16 %v1332
        %v1389 = vunpack.c.l.b16 %v1333
        %v1390 = vunpack.c.l.b16 %v1334
        %v1391 = vpack.c.b16 %v1376, %v1375
        %v1392 = vpack.c.b16 %v1378, %v1377
        %v1393 = vpack.c.b16 %v1380, %v1379
        %v1394 = vpack.c.b16 %v1382, %v1381
        %v1395 = vpack.c.b16 %v1384, %v1383
        %v1396 = vpack.c.b16 %v1386, %v1385
        %v1397 = vpack.c.b16 %v1388, %v1387
        %v1398 = vpack.c.b16 %v1390, %v1389
        %1407 = vmatpush.bf16.msra.mxu0 %v1398
        %1408 = vmatpush.bf16.msra.mxu0 %v1397
        %1409 = vmatpush.bf16.msra.mxu0 %v1396
        %1410 = vmatpush.bf16.msra.mxu0 %v1395
        %1411 = vmatpush.bf16.msra.mxu0 %v1394
        %1412 = vmatpush.bf16.msra.mxu0 %v1393
        %1413 = vmatpush.bf16.msra.mxu0 %v1392
        %1414 = vmatpush.bf16.msra.mxu0 %v1391
        %1415 = vmatmul.bf16.gmra.mxu0 %v1351
        %v1416 = vpop.f32.mrf.mxu0
        %v1417 = vadd.f32 0.0, %v1416
        %v1418 = vpop.f32.mrf.mxu0
        %v1419 = vadd.f32 0.0, %v1418
        %1420 = vmatmul.bf16.gmra.mxu0 %v1352
        %v1421 = vpop.f32.mrf.mxu0
        %v1422 = vadd.f32 0.0, %v1421
        %v1423 = vpop.f32.mrf.mxu0
        %v1424 = vadd.f32 0.0, %v1423
        %1425 = vmatmul.bf16.gmra.mxu0 %v1353
        %v1426 = vpop.f32.mrf.mxu0
        %v1427 = vadd.f32 0.0, %v1426
        %v1428 = vpop.f32.mrf.mxu0
        %v1429 = vadd.f32 0.0, %v1428
        %1430 = vmatmul.bf16.gmra.mxu0 %v1354
        %v1431 = vpop.f32.mrf.mxu0
        %v1432 = vadd.f32 0.0, %v1431
        %v1433 = vpop.f32.mrf.mxu0
        %v1434 = vadd.f32 0.0, %v1433
        %1435 = vdwg.mxu0
        %v1444 = vunpack.c.l.b16 %v1285
        %v1445 = vunpack.c.l.b16 %v1286
        %v1446 = vunpack.c.l.b16 %v1287
        %v1447 = vunpack.c.l.b16 %v1288
        %v1448 = vunpack.c.l.b16 %v1289
        %v1449 = vunpack.c.l.b16 %v1290
        %v1450 = vunpack.c.l.b16 %v1291
        %v1451 = vunpack.c.l.b16 %v1292
        %v1452 = vpack.c.b16 %v1445, %v1444
        %v1453 = vpack.c.b16 %v1447, %v1446
        %v1454 = vpack.c.b16 %v1449, %v1448
        %v1455 = vpack.c.b16 %v1451, %v1450
        %v1476 = vunpack.c.l.b16 %v1293
        %v1477 = vunpack.c.l.b16 %v1294
        %v1478 = vunpack.c.l.b16 %v1295
        %v1479 = vunpack.c.l.b16 %v1296
        %v1480 = vunpack.c.l.b16 %v1297
        %v1481 = vunpack.c.l.b16 %v1298
        %v1482 = vunpack.c.l.b16 %v1299
        %v1483 = vunpack.c.l.b16 %v1300
        %v1484 = vunpack.c.l.b16 %v1301
        %v1485 = vunpack.c.l.b16 %v1302
        %v1486 = vunpack.c.l.b16 %v1303
        %v1487 = vunpack.c.l.b16 %v1304
        %v1488 = vunpack.c.l.b16 %v1305
        %v1489 = vunpack.c.l.b16 %v1306
        %v1490 = vunpack.c.l.b16 %v1307
        %v1491 = vunpack.c.l.b16 %v1308
        %v1492 = vpack.c.b16 %v1477, %v1476
        %v1493 = vpack.c.b16 %v1479, %v1478
        %v1494 = vpack.c.b16 %v1481, %v1480
        %v1495 = vpack.c.b16 %v1483, %v1482
        %v1496 = vpack.c.b16 %v1485, %v1484
        %v1497 = vpack.c.b16 %v1487, %v1486
        %v1498 = vpack.c.b16 %v1489, %v1488
        %v1499 = vpack.c.b16 %v1491, %v1490
        %1508 = vmatpush.bf16.msra.mxu0 %v1499
        %1509 = vmatpush.bf16.msra.mxu0 %v1498
        %1510 = vmatpush.bf16.msra.mxu0 %v1497
        %1511 = vmatpush.bf16.msra.mxu0 %v1496
        %1512 = vmatpush.bf16.msra.mxu0 %v1495
        %1513 = vmatpush.bf16.msra.mxu0 %v1494
        %1514 = vmatpush.bf16.msra.mxu0 %v1493
        %1515 = vmatpush.bf16.msra.mxu0 %v1492
        %1516 = vmatmul.bf16.gmra.mxu0 %v1452
        %v1517 = vpop.f32.mrf.mxu0
        %v1518 = vadd.f32 %v1417, %v1517
        %v1519 = vpop.f32.mrf.mxu0
        %v1520 = vadd.f32 %v1419, %v1519
        %1521 = vmatmul.bf16.gmra.mxu0 %v1453
        %v1522 = vpop.f32.mrf.mxu0
        %v1523 = vadd.f32 %v1422, %v1522
        %v1524 = vpop.f32.mrf.mxu0
        %v1525 = vadd.f32 %v1424, %v1524
        %1526 = vmatmul.bf16.gmra.mxu0 %v1454
        %v1527 = vpop.f32.mrf.mxu0
        %v1528 = vadd.f32 %v1427, %v1527
        %v1529 = vpop.f32.mrf.mxu0
        %v1530 = vadd.f32 %v1429, %v1529
        %1531 = vmatmul.bf16.gmra.mxu0 %v1455
        %v1532 = vpop.f32.mrf.mxu0
        %v1533 = vadd.f32 %v1432, %v1532
        %v1534 = vpop.f32.mrf.mxu0
        %v1535 = vadd.f32 %v1434, %v1534
        %1536 = vdwg.mxu0
        %v1537 = vld [vmem:[#allocation2] sm:$0xf]
        %v1538 = vld [vmem:[#allocation2 + $0x4] sm:$0x1]
        %v1539 = vld [vmem:[#allocation2 + $0x8] sm:$0xf]
        %v1540 = vld [vmem:[#allocation2 + $0xc] sm:$0x1]
        %v1541 = vld [vmem:[#allocation2 + $0x10] sm:$0xf]
        %v1542 = vld [vmem:[#allocation2 + $0x14] sm:$0x1]
        %v1543 = vld [vmem:[#allocation2 + $0x18] sm:$0xf]
        %v1544 = vld [vmem:[#allocation2 + $0x1c] sm:$0x1]
        %v1545 = vld [vmem:[#allocation2 + $0x20] sm:$0xf]
        %v1546 = vld [vmem:[#allocation2 + $0x24] sm:$0x1]
        %v1547 = vld [vmem:[#allocation2 + $0x28] sm:$0xf]
        %v1548 = vld [vmem:[#allocation2 + $0x2c] sm:$0x1]
        %v1549 = vld [vmem:[#allocation2 + $0x30] sm:$0xf]
        %v1550 = vld [vmem:[#allocation2 + $0x34] sm:$0x1]
        %v1551 = vld [vmem:[#allocation2 + $0x38] sm:$0xf]
        %v1552 = vld [vmem:[#allocation2 + $0x3c] sm:$0x1]
        %vm1553 = vsmask.f32 3328
        %vm1554 = vsmask.f32 7440
        %vm1555 = vmor %vm1553, %vm1554
        %v1557 = vshrl.u32 %v1537, 16
        %v1559 = vrot.slane %v1557, 4
        %v1560 = vshll.u32 %v1537, 16
        %v1562 = vrot.slane %v1560, 5
        %v1563 = vor.u32 %v1559, %v1562
        %v1564 = vrot.slane %v1563, 4
        %v1566 = vshll.u32 %v1538, 16
        %v1568 = vrot.slane %v1566, 5
        %v1569 = vsel %vm1555, %v1564, %v1568
        %v1571 = vshrl.u32 %v1539, 16
        %v1573 = vrot.slane %v1571, 4
        %v1574 = vshll.u32 %v1539, 16
        %v1576 = vrot.slane %v1574, 5
        %v1577 = vor.u32 %v1573, %v1576
        %v1578 = vrot.slane %v1577, 4
        %v1580 = vshll.u32 %v1540, 16
        %v1582 = vrot.slane %v1580, 5
        %v1583 = vsel %vm1555, %v1578, %v1582
        %v1585 = vshrl.u32 %v1541, 16
        %v1587 = vrot.slane %v1585, 4
        %v1588 = vshll.u32 %v1541, 16
        %v1590 = vrot.slane %v1588, 5
        %v1591 = vor.u32 %v1587, %v1590
        %v1592 = vrot.slane %v1591, 4
        %v1594 = vshll.u32 %v1542, 16
        %v1596 = vrot.slane %v1594, 5
        %v1597 = vsel %vm1555, %v1592, %v1596
        %v1599 = vshrl.u32 %v1543, 16
        %v1601 = vrot.slane %v1599, 4
        %v1602 = vshll.u32 %v1543, 16
        %v1604 = vrot.slane %v1602, 5
        %v1605 = vor.u32 %v1601, %v1604
        %v1606 = vrot.slane %v1605, 4
        %v1608 = vshll.u32 %v1544, 16
        %v1610 = vrot.slane %v1608, 5
        %v1611 = vsel %vm1555, %v1606, %v1610
        %v1613 = vshrl.u32 %v1545, 16
        %v1615 = vrot.slane %v1613, 4
        %v1616 = vshll.u32 %v1545, 16
        %v1618 = vrot.slane %v1616, 5
        %v1619 = vor.u32 %v1615, %v1618
        %v1620 = vrot.slane %v1619, 4
        %v1622 = vshll.u32 %v1546, 16
        %v1624 = vrot.slane %v1622, 5
        %v1625 = vsel %vm1555, %v1620, %v1624
        %v1627 = vshrl.u32 %v1547, 16
        %v1629 = vrot.slane %v1627, 4
        %v1630 = vshll.u32 %v1547, 16
        %v1632 = vrot.slane %v1630, 5
        %v1633 = vor.u32 %v1629, %v1632
        %v1634 = vrot.slane %v1633, 4
        %v1636 = vshll.u32 %v1548, 16
        %v1638 = vrot.slane %v1636, 5
        %v1639 = vsel %vm1555, %v1634, %v1638
        %v1641 = vshrl.u32 %v1549, 16
        %v1643 = vrot.slane %v1641, 4
        %v1644 = vshll.u32 %v1549, 16
        %v1646 = vrot.slane %v1644, 5
        %v1647 = vor.u32 %v1643, %v1646
        %v1648 = vrot.slane %v1647, 4
        %v1650 = vshll.u32 %v1550, 16
        %v1652 = vrot.slane %v1650, 5
        %v1653 = vsel %vm1555, %v1648, %v1652
        %v1655 = vshrl.u32 %v1551, 16
        %v1657 = vrot.slane %v1655, 4
        %v1658 = vshll.u32 %v1551, 16
        %v1660 = vrot.slane %v1658, 5
        %v1661 = vor.u32 %v1657, %v1660
        %v1662 = vrot.slane %v1661, 4
        %v1664 = vshll.u32 %v1552, 16
        %v1666 = vrot.slane %v1664, 5
        %v1667 = vsel %vm1555, %v1662, %v1666
        %s1668 = scalar_lea.vmem %s4, 128
        %v1669 = vld [vmem:[%s1668] sm:$0xf]
        %v1670 = vld [vmem:[%s1668 + $0x4] sm:$0xf]
        %v1671 = vld [vmem:[%s1668 + $0x8] sm:$0xf]
        %v1672 = vld [vmem:[%s1668 + $0xc] sm:$0xf]
        %v1673 = vld [vmem:[%s1668 + $0x10] sm:$0xf]
        %v1674 = vld [vmem:[%s1668 + $0x14] sm:$0xf]
        %v1675 = vld [vmem:[%s1668 + $0x18] sm:$0xf]
        %v1676 = vld [vmem:[%s1668 + $0x1c] sm:$0xf]
        %v1677 = vld [vmem:[%s1668 + $0x20] sm:$0xf]
        %v1678 = vld [vmem:[%s1668 + $0x24] sm:$0xf]
        %v1679 = vld [vmem:[%s1668 + $0x28] sm:$0xf]
        %v1680 = vld [vmem:[%s1668 + $0x2c] sm:$0xf]
        %v1681 = vld [vmem:[%s1668 + $0x30] sm:$0xf]
        %v1682 = vld [vmem:[%s1668 + $0x34] sm:$0xf]
        %v1683 = vld [vmem:[%s1668 + $0x38] sm:$0xf]
        %v1684 = vld [vmem:[%s1668 + $0x3c] sm:$0xf]
        %v1685 = vunpack.c.l.b16 %v1569
        %v1686 = vunpack.c.l.b16 %v1583
        %v1687 = vunpack.c.l.b16 %v1597
        %v1688 = vunpack.c.l.b16 %v1611
        %v1689 = vunpack.c.l.b16 %v1625
        %v1690 = vunpack.c.l.b16 %v1639
        %v1691 = vunpack.c.l.b16 %v1653
        %v1692 = vunpack.c.l.b16 %v1667
        %v1693 = vpack.c.b16 %v1686, %v1685
        %v1694 = vpack.c.b16 %v1688, %v1687
        %v1695 = vpack.c.b16 %v1690, %v1689
        %v1696 = vpack.c.b16 %v1692, %v1691
        %v1717 = vunpack.c.l.b16 %v1669
        %v1718 = vunpack.c.l.b16 %v1670
        %v1719 = vunpack.c.l.b16 %v1671
        %v1720 = vunpack.c.l.b16 %v1672
        %v1721 = vunpack.c.l.b16 %v1673
        %v1722 = vunpack.c.l.b16 %v1674
        %v1723 = vunpack.c.l.b16 %v1675
        %v1724 = vunpack.c.l.b16 %v1676
        %v1725 = vunpack.c.l.b16 %v1677
        %v1726 = vunpack.c.l.b16 %v1678
        %v1727 = vunpack.c.l.b16 %v1679
        %v1728 = vunpack.c.l.b16 %v1680
        %v1729 = vunpack.c.l.b16 %v1681
        %v1730 = vunpack.c.l.b16 %v1682
        %v1731 = vunpack.c.l.b16 %v1683
        %v1732 = vunpack.c.l.b16 %v1684
        %v1733 = vpack.c.b16 %v1718, %v1717
        %v1734 = vpack.c.b16 %v1720, %v1719
        %v1735 = vpack.c.b16 %v1722, %v1721
        %v1736 = vpack.c.b16 %v1724, %v1723
        %v1737 = vpack.c.b16 %v1726, %v1725
        %v1738 = vpack.c.b16 %v1728, %v1727
        %v1739 = vpack.c.b16 %v1730, %v1729
        %v1740 = vpack.c.b16 %v1732, %v1731
        %1749 = vmatpush.bf16.msra.mxu0 %v1740
        %1750 = vmatpush.bf16.msra.mxu0 %v1739
        %1751 = vmatpush.bf16.msra.mxu0 %v1738
        %1752 = vmatpush.bf16.msra.mxu0 %v1737
        %1753 = vmatpush.bf16.msra.mxu0 %v1736
        %1754 = vmatpush.bf16.msra.mxu0 %v1735
        %1755 = vmatpush.bf16.msra.mxu0 %v1734
        %1756 = vmatpush.bf16.msra.mxu0 %v1733
        %1757 = vmatmul.bf16.gmra.mxu0 %v1693
        %v1758 = vpop.f32.mrf.mxu0
        %v1759 = vadd.f32 0.0, %v1758
        %v1760 = vpop.f32.mrf.mxu0
        %v1761 = vadd.f32 0.0, %v1760
        %1762 = vmatmul.bf16.gmra.mxu0 %v1694
        %v1763 = vpop.f32.mrf.mxu0
        %v1764 = vadd.f32 0.0, %v1763
        %v1765 = vpop.f32.mrf.mxu0
        %v1766 = vadd.f32 0.0, %v1765
        %1767 = vmatmul.bf16.gmra.mxu0 %v1695
        %v1768 = vpop.f32.mrf.mxu0
        %v1769 = vadd.f32 0.0, %v1768
        %v1770 = vpop.f32.mrf.mxu0
        %v1771 = vadd.f32 0.0, %v1770
        %1772 = vmatmul.bf16.gmra.mxu0 %v1696
        %v1773 = vpop.f32.mrf.mxu0
        %v1774 = vadd.f32 0.0, %v1773
        %v1775 = vpop.f32.mrf.mxu0
        %v1776 = vadd.f32 0.0, %v1775
        %1777 = vdwg.mxu0
        %v1778 = vadd.f32 %v1518, %v1759
        %v1779 = vadd.f32 %v1520, %v1761
        %v1780 = vadd.f32 %v1523, %v1764
        %v1781 = vadd.f32 %v1525, %v1766
        %v1782 = vadd.f32 %v1528, %v1769
        %v1783 = vadd.f32 %v1530, %v1771
        %v1784 = vadd.f32 %v1533, %v1774
        %v1785 = vadd.f32 %v1535, %v1776
        %s1786 = scalar_lea.vmem [#allocation2], 144
        %v1787 = vld [vmem:[%s1786] sm:$0xf]
        %v1788 = vld [vmem:[%s1786 + $0x8] sm:$0xf]
        %v1789 = vld [vmem:[%s1786 + $0x10] sm:$0xf]
        %v1790 = vld [vmem:[%s1786 + $0x18] sm:$0xf]
        %v1791 = vld [vmem:[%s1786 + $0x20] sm:$0xf]
        %v1792 = vld [vmem:[%s1786 + $0x28] sm:$0xf]
        %v1793 = vld [vmem:[%s1786 + $0x30] sm:$0xf]
        %v1794 = vld [vmem:[%s1786 + $0x38] sm:$0xf]
        %s1795 = scalar_lea.vmem %s4, 192
        %v1796 = vld [vmem:[%s1795] sm:$0xf]
        %v1797 = vld [vmem:[%s1795 + $0x4] sm:$0xf]
        %v1798 = vld [vmem:[%s1795 + $0x8] sm:$0xf]
        %v1799 = vld [vmem:[%s1795 + $0xc] sm:$0xf]
        %v1800 = vld [vmem:[%s1795 + $0x10] sm:$0xf]
        %v1801 = vld [vmem:[%s1795 + $0x14] sm:$0xf]
        %v1802 = vld [vmem:[%s1795 + $0x18] sm:$0xf]
        %v1803 = vld [vmem:[%s1795 + $0x1c] sm:$0xf]
        %v1804 = vld [vmem:[%s1795 + $0x20] sm:$0xf]
        %v1805 = vld [vmem:[%s1795 + $0x24] sm:$0xf]
        %v1806 = vld [vmem:[%s1795 + $0x28] sm:$0xf]
        %v1807 = vld [vmem:[%s1795 + $0x2c] sm:$0xf]
        %v1808 = vld [vmem:[%s1795 + $0x30] sm:$0xf]
        %v1809 = vld [vmem:[%s1795 + $0x34] sm:$0xf]
        %v1810 = vld [vmem:[%s1795 + $0x38] sm:$0xf]
        %v1811 = vld [vmem:[%s1795 + $0x3c] sm:$0xf]
        %v1820 = vunpack.c.l.b16 %v1787
        %v1821 = vunpack.c.l.b16 %v1788
        %v1822 = vunpack.c.l.b16 %v1789
        %v1823 = vunpack.c.l.b16 %v1790
        %v1824 = vunpack.c.l.b16 %v1791
        %v1825 = vunpack.c.l.b16 %v1792
        %v1826 = vunpack.c.l.b16 %v1793
        %v1827 = vunpack.c.l.b16 %v1794
        %v1828 = vpack.c.b16 %v1821, %v1820
        %v1829 = vpack.c.b16 %v1823, %v1822
        %v1830 = vpack.c.b16 %v1825, %v1824
        %v1831 = vpack.c.b16 %v1827, %v1826
        %v1852 = vunpack.c.l.b16 %v1796
        %v1853 = vunpack.c.l.b16 %v1797
        %v1854 = vunpack.c.l.b16 %v1798
        %v1855 = vunpack.c.l.b16 %v1799
        %v1856 = vunpack.c.l.b16 %v1800
        %v1857 = vunpack.c.l.b16 %v1801
        %v1858 = vunpack.c.l.b16 %v1802
        %v1859 = vunpack.c.l.b16 %v1803
        %v1860 = vunpack.c.l.b16 %v1804
        %v1861 = vunpack.c.l.b16 %v1805
        %v1862 = vunpack.c.l.b16 %v1806
        %v1863 = vunpack.c.l.b16 %v1807
        %v1864 = vunpack.c.l.b16 %v1808
        %v1865 = vunpack.c.l.b16 %v1809
        %v1866 = vunpack.c.l.b16 %v1810
        %v1867 = vunpack.c.l.b16 %v1811
        %v1868 = vpack.c.b16 %v1853, %v1852
        %v1869 = vpack.c.b16 %v1855, %v1854
        %v1870 = vpack.c.b16 %v1857, %v1856
        %v1871 = vpack.c.b16 %v1859, %v1858
        %v1872 = vpack.c.b16 %v1861, %v1860
        %v1873 = vpack.c.b16 %v1863, %v1862
        %v1874 = vpack.c.b16 %v1865, %v1864
        %v1875 = vpack.c.b16 %v1867, %v1866
        %1884 = vmatpush.bf16.msra.mxu0 %v1875
        %1885 = vmatpush.bf16.msra.mxu0 %v1874
        %1886 = vmatpush.bf16.msra.mxu0 %v1873
        %1887 = vmatpush.bf16.msra.mxu0 %v1872
        %1888 = vmatpush.bf16.msra.mxu0 %v1871
        %1889 = vmatpush.bf16.msra.mxu0 %v1870
        %1890 = vmatpush.bf16.msra.mxu0 %v1869
        %1891 = vmatpush.bf16.msra.mxu0 %v1868
        %1892 = vmatmul.bf16.gmra.mxu0 %v1828
        %v1893 = vpop.f32.mrf.mxu0
        %v1894 = vadd.f32 0.0, %v1893
        %v1895 = vpop.f32.mrf.mxu0
        %v1896 = vadd.f32 0.0, %v1895
        %1897 = vmatmul.bf16.gmra.mxu0 %v1829
        %v1898 = vpop.f32.mrf.mxu0
        %v1899 = vadd.f32 0.0, %v1898
        %v1900 = vpop.f32.mrf.mxu0
        %v1901 = vadd.f32 0.0, %v1900
        %1902 = vmatmul.bf16.gmra.mxu0 %v1830
        %v1903 = vpop.f32.mrf.mxu0
        %v1904 = vadd.f32 0.0, %v1903
        %v1905 = vpop.f32.mrf.mxu0
        %v1906 = vadd.f32 0.0, %v1905
        %1907 = vmatmul.bf16.gmra.mxu0 %v1831
        %v1908 = vpop.f32.mrf.mxu0
        %v1909 = vadd.f32 0.0, %v1908
        %v1910 = vpop.f32.mrf.mxu0
        %v1911 = vadd.f32 0.0, %v1910
        %1912 = vdwg.mxu0
        %v1913 = vadd.f32 %v1778, %v1894
        %v1914 = vadd.f32 %v1779, %v1896
        %v1915 = vadd.f32 %v1780, %v1899
        %v1916 = vadd.f32 %v1781, %v1901
        %v1917 = vadd.f32 %v1782, %v1904
        %v1918 = vadd.f32 %v1783, %v1906
        %v1919 = vadd.f32 %v1784, %v1909
        %v1920 = vadd.f32 %v1785, %v1911
        %s1921 = scalar_lea.vmem [#allocation2], 216
        %v1922 = vld [vmem:[%s1921] sm:$0xf]
        %v1923 = vld [vmem:[%s1921 + $0x8] sm:$0xf]
        %v1924 = vld [vmem:[%s1921 + $0x10] sm:$0xf]
        %v1925 = vld [vmem:[%s1921 + $0x18] sm:$0xf]
        %v1926 = vld [vmem:[%s1921 + $0x20] sm:$0xf]
        %v1927 = vld [vmem:[%s1921 + $0x28] sm:$0xf]
        %v1928 = vld [vmem:[%s1921 + $0x30] sm:$0xf]
        %v1929 = vld [vmem:[%s1921 + $0x38] sm:$0xf]
        %s1930 = scalar_lea.vmem %s4, 256
        %v1931 = vld [vmem:[%s1930] sm:$0xf]
        %v1932 = vld [vmem:[%s1930 + $0x4] sm:$0xf]
        %v1933 = vld [vmem:[%s1930 + $0x8] sm:$0xf]
        %v1934 = vld [vmem:[%s1930 + $0xc] sm:$0xf]
        %v1935 = vld [vmem:[%s1930 + $0x10] sm:$0xf]
        %v1936 = vld [vmem:[%s1930 + $0x14] sm:$0xf]
        %v1937 = vld [vmem:[%s1930 + $0x18] sm:$0xf]
        %v1938 = vld [vmem:[%s1930 + $0x1c] sm:$0xf]
        %v1939 = vld [vmem:[%s1930 + $0x20] sm:$0xf]
        %v1940 = vld [vmem:[%s1930 + $0x24] sm:$0xf]
        %v1941 = vld [vmem:[%s1930 + $0x28] sm:$0xf]
        %v1942 = vld [vmem:[%s1930 + $0x2c] sm:$0xf]
        %v1943 = vld [vmem:[%s1930 + $0x30] sm:$0xf]
        %v1944 = vld [vmem:[%s1930 + $0x34] sm:$0xf]
        %v1945 = vld [vmem:[%s1930 + $0x38] sm:$0xf]
        %v1946 = vld [vmem:[%s1930 + $0x3c] sm:$0xf]
        %v1955 = vunpack.c.l.b16 %v1922
        %v1956 = vunpack.c.l.b16 %v1923
        %v1957 = vunpack.c.l.b16 %v1924
        %v1958 = vunpack.c.l.b16 %v1925
        %v1959 = vunpack.c.l.b16 %v1926
        %v1960 = vunpack.c.l.b16 %v1927
        %v1961 = vunpack.c.l.b16 %v1928
        %v1962 = vunpack.c.l.b16 %v1929
        %v1963 = vpack.c.b16 %v1956, %v1955
        %v1964 = vpack.c.b16 %v1958, %v1957
        %v1965 = vpack.c.b16 %v1960, %v1959
        %v1966 = vpack.c.b16 %v1962, %v1961
        %v1987 = vunpack.c.l.b16 %v1931
        %v1988 = vunpack.c.l.b16 %v1932
        %v1989 = vunpack.c.l.b16 %v1933
        %v1990 = vunpack.c.l.b16 %v1934
        %v1991 = vunpack.c.l.b16 %v1935
        %v1992 = vunpack.c.l.b16 %v1936
        %v1993 = vunpack.c.l.b16 %v1937
        %v1994 = vunpack.c.l.b16 %v1938
        %v1995 = vunpack.c.l.b16 %v1939
        %v1996 = vunpack.c.l.b16 %v1940
        %v1997 = vunpack.c.l.b16 %v1941
        %v1998 = vunpack.c.l.b16 %v1942
        %v1999 = vunpack.c.l.b16 %v1943
        %v2000 = vunpack.c.l.b16 %v1944
        %v2001 = vunpack.c.l.b16 %v1945
        %v2002 = vunpack.c.l.b16 %v1946
        %v2003 = vpack.c.b16 %v1988, %v1987
        %v2004 = vpack.c.b16 %v1990, %v1989
        %v2005 = vpack.c.b16 %v1992, %v1991
        %v2006 = vpack.c.b16 %v1994, %v1993
        %v2007 = vpack.c.b16 %v1996, %v1995
        %v2008 = vpack.c.b16 %v1998, %v1997
        %v2009 = vpack.c.b16 %v2000, %v1999
        %v2010 = vpack.c.b16 %v2002, %v2001
        %2019 = vmatpush.bf16.msra.mxu0 %v2010
        %2020 = vmatpush.bf16.msra.mxu0 %v2009
        %2021 = vmatpush.bf16.msra.mxu0 %v2008
        %2022 = vmatpush.bf16.msra.mxu0 %v2007
        %2023 = vmatpush.bf16.msra.mxu0 %v2006
        %2024 = vmatpush.bf16.msra.mxu0 %v2005
        %2025 = vmatpush.bf16.msra.mxu0 %v2004
        %2026 = vmatpush.bf16.msra.mxu0 %v2003
        %2027 = vmatmul.bf16.gmra.mxu0 %v1963
        %v2028 = vpop.f32.mrf.mxu0
        %v2029 = vadd.f32 0.0, %v2028
        %v2030 = vpop.f32.mrf.mxu0
        %v2031 = vadd.f32 0.0, %v2030
        %2032 = vmatmul.bf16.gmra.mxu0 %v1964
        %v2033 = vpop.f32.mrf.mxu0
        %v2034 = vadd.f32 0.0, %v2033
        %v2035 = vpop.f32.mrf.mxu0
        %v2036 = vadd.f32 0.0, %v2035
        %2037 = vmatmul.bf16.gmra.mxu0 %v1965
        %v2038 = vpop.f32.mrf.mxu0
        %v2039 = vadd.f32 0.0, %v2038
        %v2040 = vpop.f32.mrf.mxu0
        %v2041 = vadd.f32 0.0, %v2040
        %2042 = vmatmul.bf16.gmra.mxu0 %v1966
        %v2043 = vpop.f32.mrf.mxu0
        %v2044 = vadd.f32 0.0, %v2043
        %v2045 = vpop.f32.mrf.mxu0
        %v2046 = vadd.f32 0.0, %v2045
        %2047 = vdwg.mxu0
        %v2048 = vadd.f32 %v1913, %v2029
        %v2049 = vadd.f32 %v1914, %v2031
        %v2050 = vadd.f32 %v1915, %v2034
        %v2051 = vadd.f32 %v1916, %v2036
        %v2052 = vadd.f32 %v1917, %v2039
        %v2053 = vadd.f32 %v1918, %v2041
        %v2054 = vadd.f32 %v1919, %v2044
        %v2055 = vadd.f32 %v1920, %v2046
        %v2056 = vld [vmem:[%s1786] sm:$0xf]
        %v2057 = vld [vmem:[%s1786 + $0x4] sm:$0x1]
        %v2058 = vld [vmem:[%s1786 + $0x8] sm:$0xf]
        %v2059 = vld [vmem:[%s1786 + $0xc] sm:$0x1]
        %v2060 = vld [vmem:[%s1786 + $0x10] sm:$0xf]
        %v2061 = vld [vmem:[%s1786 + $0x14] sm:$0x1]
        %v2062 = vld [vmem:[%s1786 + $0x18] sm:$0xf]
        %v2063 = vld [vmem:[%s1786 + $0x1c] sm:$0x1]
        %v2064 = vld [vmem:[%s1786 + $0x20] sm:$0xf]
        %v2065 = vld [vmem:[%s1786 + $0x24] sm:$0x1]
        %v2066 = vld [vmem:[%s1786 + $0x28] sm:$0xf]
        %v2067 = vld [vmem:[%s1786 + $0x2c] sm:$0x1]
        %v2068 = vld [vmem:[%s1786 + $0x30] sm:$0xf]
        %v2069 = vld [vmem:[%s1786 + $0x34] sm:$0x1]
        %v2070 = vld [vmem:[%s1786 + $0x38] sm:$0xf]
        %v2071 = vld [vmem:[%s1786 + $0x3c] sm:$0x1]
        %v2073 = vshrl.u32 %v2056, 16
        %v2075 = vrot.slane %v2073, 4
        %v2076 = vshll.u32 %v2056, 16
        %v2078 = vrot.slane %v2076, 5
        %v2079 = vor.u32 %v2075, %v2078
        %v2080 = vrot.slane %v2079, 4
        %v2082 = vshll.u32 %v2057, 16
        %v2084 = vrot.slane %v2082, 5
        %v2085 = vsel %vm1555, %v2080, %v2084
        %v2087 = vshrl.u32 %v2058, 16
        %v2089 = vrot.slane %v2087, 4
        %v2090 = vshll.u32 %v2058, 16
        %v2092 = vrot.slane %v2090, 5
        %v2093 = vor.u32 %v2089, %v2092
        %v2094 = vrot.slane %v2093, 4
        %v2096 = vshll.u32 %v2059, 16
        %v2098 = vrot.slane %v2096, 5
        %v2099 = vsel %vm1555, %v2094, %v2098
        %v2101 = vshrl.u32 %v2060, 16
        %v2103 = vrot.slane %v2101, 4
        %v2104 = vshll.u32 %v2060, 16
        %v2106 = vrot.slane %v2104, 5
        %v2107 = vor.u32 %v2103, %v2106
        %v2108 = vrot.slane %v2107, 4
        %v2110 = vshll.u32 %v2061, 16
        %v2112 = vrot.slane %v2110, 5
        %v2113 = vsel %vm1555, %v2108, %v2112
        %v2115 = vshrl.u32 %v2062, 16
        %v2117 = vrot.slane %v2115, 4
        %v2118 = vshll.u32 %v2062, 16
        %v2120 = vrot.slane %v2118, 5
        %v2121 = vor.u32 %v2117, %v2120
        %v2122 = vrot.slane %v2121, 4
        %v2124 = vshll.u32 %v2063, 16
        %v2126 = vrot.slane %v2124, 5
        %v2127 = vsel %vm1555, %v2122, %v2126
        %v2129 = vshrl.u32 %v2064, 16
        %v2131 = vrot.slane %v2129, 4
        %v2132 = vshll.u32 %v2064, 16
        %v2134 = vrot.slane %v2132, 5
        %v2135 = vor.u32 %v2131, %v2134
        %v2136 = vrot.slane %v2135, 4
        %v2138 = vshll.u32 %v2065, 16
        %v2140 = vrot.slane %v2138, 5
        %v2141 = vsel %vm1555, %v2136, %v2140
        %v2143 = vshrl.u32 %v2066, 16
        %v2145 = vrot.slane %v2143, 4
        %v2146 = vshll.u32 %v2066, 16
        %v2148 = vrot.slane %v2146, 5
        %v2149 = vor.u32 %v2145, %v2148
        %v2150 = vrot.slane %v2149, 4
        %v2152 = vshll.u32 %v2067, 16
        %v2154 = vrot.slane %v2152, 5
        %v2155 = vsel %vm1555, %v2150, %v2154
        %v2157 = vshrl.u32 %v2068, 16
        %v2159 = vrot.slane %v2157, 4
        %v2160 = vshll.u32 %v2068, 16
        %v2162 = vrot.slane %v2160, 5
        %v2163 = vor.u32 %v2159, %v2162
        %v2164 = vrot.slane %v2163, 4
        %v2166 = vshll.u32 %v2069, 16
        %v2168 = vrot.slane %v2166, 5
        %v2169 = vsel %vm1555, %v2164, %v2168
        %v2171 = vshrl.u32 %v2070, 16
        %v2173 = vrot.slane %v2171, 4
        %v2174 = vshll.u32 %v2070, 16
        %v2176 = vrot.slane %v2174, 5
        %v2177 = vor.u32 %v2173, %v2176
        %v2178 = vrot.slane %v2177, 4
        %v2180 = vshll.u32 %v2071, 16
        %v2182 = vrot.slane %v2180, 5
        %v2183 = vsel %vm1555, %v2178, %v2182
        %s2184 = scalar_lea.vmem %s4, 320
        %v2185 = vld [vmem:[%s2184] sm:$0xf]
        %v2186 = vld [vmem:[%s2184 + $0x4] sm:$0xf]
        %v2187 = vld [vmem:[%s2184 + $0x8] sm:$0xf]
        %v2188 = vld [vmem:[%s2184 + $0xc] sm:$0xf]
        %v2189 = vld [vmem:[%s2184 + $0x10] sm:$0xf]
        %v2190 = vld [vmem:[%s2184 + $0x14] sm:$0xf]
        %v2191 = vld [vmem:[%s2184 + $0x18] sm:$0xf]
        %v2192 = vld [vmem:[%s2184 + $0x1c] sm:$0xf]
        %v2193 = vld [vmem:[%s2184 + $0x20] sm:$0xf]
        %v2194 = vld [vmem:[%s2184 + $0x24] sm:$0xf]
        %v2195 = vld [vmem:[%s2184 + $0x28] sm:$0xf]
        %v2196 = vld [vmem:[%s2184 + $0x2c] sm:$0xf]
        %v2197 = vld [vmem:[%s2184 + $0x30] sm:$0xf]
        %v2198 = vld [vmem:[%s2184 + $0x34] sm:$0xf]
        %v2199 = vld [vmem:[%s2184 + $0x38] sm:$0xf]
        %v2200 = vld [vmem:[%s2184 + $0x3c] sm:$0xf]
        %v2201 = vunpack.c.l.b16 %v2085
        %v2202 = vunpack.c.l.b16 %v2099
        %v2203 = vunpack.c.l.b16 %v2113
        %v2204 = vunpack.c.l.b16 %v2127
        %v2205 = vunpack.c.l.b16 %v2141
        %v2206 = vunpack.c.l.b16 %v2155
        %v2207 = vunpack.c.l.b16 %v2169
        %v2208 = vunpack.c.l.b16 %v2183
        %v2209 = vpack.c.b16 %v2202, %v2201
        %v2210 = vpack.c.b16 %v2204, %v2203
        %v2211 = vpack.c.b16 %v2206, %v2205
        %v2212 = vpack.c.b16 %v2208, %v2207
        %v2233 = vunpack.c.l.b16 %v2185
        %v2234 = vunpack.c.l.b16 %v2186
        %v2235 = vunpack.c.l.b16 %v2187
        %v2236 = vunpack.c.l.b16 %v2188
        %v2237 = vunpack.c.l.b16 %v2189
        %v2238 = vunpack.c.l.b16 %v2190
        %v2239 = vunpack.c.l.b16 %v2191
        %v2240 = vunpack.c.l.b16 %v2192
        %v2241 = vunpack.c.l.b16 %v2193
        %v2242 = vunpack.c.l.b16 %v2194
        %v2243 = vunpack.c.l.b16 %v2195
        %v2244 = vunpack.c.l.b16 %v2196
        %v2245 = vunpack.c.l.b16 %v2197
        %v2246 = vunpack.c.l.b16 %v2198
        %v2247 = vunpack.c.l.b16 %v2199
        %v2248 = vunpack.c.l.b16 %v2200
        %v2249 = vpack.c.b16 %v2234, %v2233
        %v2250 = vpack.c.b16 %v2236, %v2235
        %v2251 = vpack.c.b16 %v2238, %v2237
        %v2252 = vpack.c.b16 %v2240, %v2239
        %v2253 = vpack.c.b16 %v2242, %v2241
        %v2254 = vpack.c.b16 %v2244, %v2243
        %v2255 = vpack.c.b16 %v2246, %v2245
        %v2256 = vpack.c.b16 %v2248, %v2247
        %2265 = vmatpush.bf16.msra.mxu0 %v2256
        %2266 = vmatpush.bf16.msra.mxu0 %v2255
        %2267 = vmatpush.bf16.msra.mxu0 %v2254
        %2268 = vmatpush.bf16.msra.mxu0 %v2253
        %2269 = vmatpush.bf16.msra.mxu0 %v2252
        %2270 = vmatpush.bf16.msra.mxu0 %v2251
        %2271 = vmatpush.bf16.msra.mxu0 %v2250
        %2272 = vmatpush.bf16.msra.mxu0 %v2249
        %2273 = vmatmul.bf16.gmra.mxu0 %v2209
        %v2274 = vpop.f32.mrf.mxu0
        %v2275 = vadd.f32 0.0, %v2274
        %v2276 = vpop.f32.mrf.mxu0
        %v2277 = vadd.f32 0.0, %v2276
        %2278 = vmatmul.bf16.gmra.mxu0 %v2210
        %v2279 = vpop.f32.mrf.mxu0
        %v2280 = vadd.f32 0.0, %v2279
        %v2281 = vpop.f32.mrf.mxu0
        %v2282 = vadd.f32 0.0, %v2281
        %2283 = vmatmul.bf16.gmra.mxu0 %v2211
        %v2284 = vpop.f32.mrf.mxu0
        %v2285 = vadd.f32 0.0, %v2284
        %v2286 = vpop.f32.mrf.mxu0
        %v2287 = vadd.f32 0.0, %v2286
        %2288 = vmatmul.bf16.gmra.mxu0 %v2212
        %v2289 = vpop.f32.mrf.mxu0
        %v2290 = vadd.f32 0.0, %v2289
        %v2291 = vpop.f32.mrf.mxu0
        %v2292 = vadd.f32 0.0, %v2291
        %2293 = vdwg.mxu0
        %v2294 = vadd.f32 %v2048, %v2275
        %v2295 = vadd.f32 %v2049, %v2277
        %v2296 = vadd.f32 %v2050, %v2280
        %v2297 = vadd.f32 %v2051, %v2282
        %v2298 = vadd.f32 %v2052, %v2285
        %v2299 = vadd.f32 %v2053, %v2287
        %v2300 = vadd.f32 %v2054, %v2290
        %v2301 = vadd.f32 %v2055, %v2292
        %s2302 = scalar_lea.vmem [#allocation2], 8
        %v2303 = vld [vmem:[%s2302] sm:$0xf]
        %v2304 = vld [vmem:[%s2302 + $0x8] sm:$0xf]
        %v2305 = vld [vmem:[%s2302 + $0x10] sm:$0xf]
        %v2306 = vld [vmem:[%s2302 + $0x18] sm:$0xf]
        %v2307 = vld [vmem:[%s2302 + $0x20] sm:$0xf]
        %v2308 = vld [vmem:[%s2302 + $0x28] sm:$0xf]
        %v2309 = vld [vmem:[%s2302 + $0x30] sm:$0xf]
        %v2310 = vld [vmem:[%s2302 + $0x38] sm:$0xf]
        %s2311 = scalar_lea.vmem %s4, 384
        %v2312 = vld [vmem:[%s2311] sm:$0xf]
        %v2313 = vld [vmem:[%s2311 + $0x4] sm:$0xf]
        %v2314 = vld [vmem:[%s2311 + $0x8] sm:$0xf]
        %v2315 = vld [vmem:[%s2311 + $0xc] sm:$0xf]
        %v2316 = vld [vmem:[%s2311 + $0x10] sm:$0xf]
        %v2317 = vld [vmem:[%s2311 + $0x14] sm:$0xf]
        %v2318 = vld [vmem:[%s2311 + $0x18] sm:$0xf]
        %v2319 = vld [vmem:[%s2311 + $0x1c] sm:$0xf]
        %v2320 = vld [vmem:[%s2311 + $0x20] sm:$0xf]
        %v2321 = vld [vmem:[%s2311 + $0x24] sm:$0xf]
        %v2322 = vld [vmem:[%s2311 + $0x28] sm:$0xf]
        %v2323 = vld [vmem:[%s2311 + $0x2c] sm:$0xf]
        %v2324 = vld [vmem:[%s2311 + $0x30] sm:$0xf]
        %v2325 = vld [vmem:[%s2311 + $0x34] sm:$0xf]
        %v2326 = vld [vmem:[%s2311 + $0x38] sm:$0xf]
        %v2327 = vld [vmem:[%s2311 + $0x3c] sm:$0xf]
        %v2336 = vunpack.c.l.b16 %v2303
        %v2337 = vunpack.c.l.b16 %v2304
        %v2338 = vunpack.c.l.b16 %v2305
        %v2339 = vunpack.c.l.b16 %v2306
        %v2340 = vunpack.c.l.b16 %v2307
        %v2341 = vunpack.c.l.b16 %v2308
        %v2342 = vunpack.c.l.b16 %v2309
        %v2343 = vunpack.c.l.b16 %v2310
        %v2344 = vpack.c.b16 %v2337, %v2336
        %v2345 = vpack.c.b16 %v2339, %v2338
        %v2346 = vpack.c.b16 %v2341, %v2340
        %v2347 = vpack.c.b16 %v2343, %v2342
        %v2368 = vunpack.c.l.b16 %v2312
        %v2369 = vunpack.c.l.b16 %v2313
        %v2370 = vunpack.c.l.b16 %v2314
        %v2371 = vunpack.c.l.b16 %v2315
        %v2372 = vunpack.c.l.b16 %v2316
        %v2373 = vunpack.c.l.b16 %v2317
        %v2374 = vunpack.c.l.b16 %v2318
        %v2375 = vunpack.c.l.b16 %v2319
        %v2376 = vunpack.c.l.b16 %v2320
        %v2377 = vunpack.c.l.b16 %v2321
        %v2378 = vunpack.c.l.b16 %v2322
        %v2379 = vunpack.c.l.b16 %v2323
        %v2380 = vunpack.c.l.b16 %v2324
        %v2381 = vunpack.c.l.b16 %v2325
        %v2382 = vunpack.c.l.b16 %v2326
        %v2383 = vunpack.c.l.b16 %v2327
        %v2384 = vpack.c.b16 %v2369, %v2368
        %v2385 = vpack.c.b16 %v2371, %v2370
        %v2386 = vpack.c.b16 %v2373, %v2372
        %v2387 = vpack.c.b16 %v2375, %v2374
        %v2388 = vpack.c.b16 %v2377, %v2376
        %v2389 = vpack.c.b16 %v2379, %v2378
        %v2390 = vpack.c.b16 %v2381, %v2380
        %v2391 = vpack.c.b16 %v2383, %v2382
        %2400 = vmatpush.bf16.msra.mxu0 %v2391
        %2401 = vmatpush.bf16.msra.mxu0 %v2390
        %2402 = vmatpush.bf16.msra.mxu0 %v2389
        %2403 = vmatpush.bf16.msra.mxu0 %v2388
        %2404 = vmatpush.bf16.msra.mxu0 %v2387
        %2405 = vmatpush.bf16.msra.mxu0 %v2386
        %2406 = vmatpush.bf16.msra.mxu0 %v2385
        %2407 = vmatpush.bf16.msra.mxu0 %v2384
        %2408 = vmatmul.bf16.gmra.mxu0 %v2344
        %v2409 = vpop.f32.mrf.mxu0
        %v2410 = vadd.f32 0.0, %v2409
        %v2411 = vpop.f32.mrf.mxu0
        %v2412 = vadd.f32 0.0, %v2411
        %2413 = vmatmul.bf16.gmra.mxu0 %v2345
        %v2414 = vpop.f32.mrf.mxu0
        %v2415 = vadd.f32 0.0, %v2414
        %v2416 = vpop.f32.mrf.mxu0
        %v2417 = vadd.f32 0.0, %v2416
        %2418 = vmatmul.bf16.gmra.mxu0 %v2346
        %v2419 = vpop.f32.mrf.mxu0
        %v2420 = vadd.f32 0.0, %v2419
        %v2421 = vpop.f32.mrf.mxu0
        %v2422 = vadd.f32 0.0, %v2421
        %2423 = vmatmul.bf16.gmra.mxu0 %v2347
        %v2424 = vpop.f32.mrf.mxu0
        %v2425 = vadd.f32 0.0, %v2424
        %v2426 = vpop.f32.mrf.mxu0
        %v2427 = vadd.f32 0.0, %v2426
        %2428 = vdwg.mxu0
        %v2429 = vadd.f32 %v2294, %v2410
        %v2430 = vadd.f32 %v2295, %v2412
        %v2431 = vadd.f32 %v2296, %v2415
        %v2432 = vadd.f32 %v2297, %v2417
        %v2433 = vadd.f32 %v2298, %v2420
        %v2434 = vadd.f32 %v2299, %v2422
        %v2435 = vadd.f32 %v2300, %v2425
        %v2436 = vadd.f32 %v2301, %v2427
        %s2437 = scalar_lea.vmem [#allocation2], 80
        %v2438 = vld [vmem:[%s2437] sm:$0xf]
        %v2439 = vld [vmem:[%s2437 + $0x8] sm:$0xf]
        %v2440 = vld [vmem:[%s2437 + $0x10] sm:$0xf]
        %v2441 = vld [vmem:[%s2437 + $0x18] sm:$0xf]
        %v2442 = vld [vmem:[%s2437 + $0x20] sm:$0xf]
        %v2443 = vld [vmem:[%s2437 + $0x28] sm:$0xf]
        %v2444 = vld [vmem:[%s2437 + $0x30] sm:$0xf]
        %v2445 = vld [vmem:[%s2437 + $0x38] sm:$0xf]
        %s2446 = scalar_lea.vmem %s4, 448
        %v2447 = vld [vmem:[%s2446] sm:$0xf]
        %v2448 = vld [vmem:[%s2446 + $0x4] sm:$0xf]
        %v2449 = vld [vmem:[%s2446 + $0x8] sm:$0xf]
        %v2450 = vld [vmem:[%s2446 + $0xc] sm:$0xf]
        %v2451 = vld [vmem:[%s2446 + $0x10] sm:$0xf]
        %v2452 = vld [vmem:[%s2446 + $0x14] sm:$0xf]
        %v2453 = vld [vmem:[%s2446 + $0x18] sm:$0xf]
        %v2454 = vld [vmem:[%s2446 + $0x1c] sm:$0xf]
        %v2455 = vld [vmem:[%s2446 + $0x20] sm:$0xf]
        %v2456 = vld [vmem:[%s2446 + $0x24] sm:$0xf]
        %v2457 = vld [vmem:[%s2446 + $0x28] sm:$0xf]
        %v2458 = vld [vmem:[%s2446 + $0x2c] sm:$0xf]
        %v2459 = vld [vmem:[%s2446 + $0x30] sm:$0xf]
        %v2460 = vld [vmem:[%s2446 + $0x34] sm:$0xf]
        %v2461 = vld [vmem:[%s2446 + $0x38] sm:$0xf]
        %v2462 = vld [vmem:[%s2446 + $0x3c] sm:$0xf]
        %v2471 = vunpack.c.l.b16 %v2438
        %v2472 = vunpack.c.l.b16 %v2439
        %v2473 = vunpack.c.l.b16 %v2440
        %v2474 = vunpack.c.l.b16 %v2441
        %v2475 = vunpack.c.l.b16 %v2442
        %v2476 = vunpack.c.l.b16 %v2443
        %v2477 = vunpack.c.l.b16 %v2444
        %v2478 = vunpack.c.l.b16 %v2445
        %v2479 = vpack.c.b16 %v2472, %v2471
        %v2480 = vpack.c.b16 %v2474, %v2473
        %v2481 = vpack.c.b16 %v2476, %v2475
        %v2482 = vpack.c.b16 %v2478, %v2477
        %v2503 = vunpack.c.l.b16 %v2447
        %v2504 = vunpack.c.l.b16 %v2448
        %v2505 = vunpack.c.l.b16 %v2449
        %v2506 = vunpack.c.l.b16 %v2450
        %v2507 = vunpack.c.l.b16 %v2451
        %v2508 = vunpack.c.l.b16 %v2452
        %v2509 = vunpack.c.l.b16 %v2453
        %v2510 = vunpack.c.l.b16 %v2454
        %v2511 = vunpack.c.l.b16 %v2455
        %v2512 = vunpack.c.l.b16 %v2456
        %v2513 = vunpack.c.l.b16 %v2457
        %v2514 = vunpack.c.l.b16 %v2458
        %v2515 = vunpack.c.l.b16 %v2459
        %v2516 = vunpack.c.l.b16 %v2460
        %v2517 = vunpack.c.l.b16 %v2461
        %v2518 = vunpack.c.l.b16 %v2462
        %v2519 = vpack.c.b16 %v2504, %v2503
        %v2520 = vpack.c.b16 %v2506, %v2505
        %v2521 = vpack.c.b16 %v2508, %v2507
        %v2522 = vpack.c.b16 %v2510, %v2509
        %v2523 = vpack.c.b16 %v2512, %v2511
        %v2524 = vpack.c.b16 %v2514, %v2513
        %v2525 = vpack.c.b16 %v2516, %v2515
        %v2526 = vpack.c.b16 %v2518, %v2517
        %2535 = vmatpush.bf16.msra.mxu0 %v2526
        %2536 = vmatpush.bf16.msra.mxu0 %v2525
        %2537 = vmatpush.bf16.msra.mxu0 %v2524
        %2538 = vmatpush.bf16.msra.mxu0 %v2523
        %2539 = vmatpush.bf16.msra.mxu0 %v2522
        %2540 = vmatpush.bf16.msra.mxu0 %v2521
        %2541 = vmatpush.bf16.msra.mxu0 %v2520
        %2542 = vmatpush.bf16.msra.mxu0 %v2519
        %2543 = vmatmul.bf16.gmra.mxu0 %v2479
        %v2544 = vpop.f32.mrf.mxu0
        %v2545 = vadd.f32 0.0, %v2544
        %v2546 = vpop.f32.mrf.mxu0
        %v2547 = vadd.f32 0.0, %v2546
        %2548 = vmatmul.bf16.gmra.mxu0 %v2480
        %v2549 = vpop.f32.mrf.mxu0
        %v2550 = vadd.f32 0.0, %v2549
        %v2551 = vpop.f32.mrf.mxu0
        %v2552 = vadd.f32 0.0, %v2551
        %2553 = vmatmul.bf16.gmra.mxu0 %v2481
        %v2554 = vpop.f32.mrf.mxu0
        %v2555 = vadd.f32 0.0, %v2554
        %v2556 = vpop.f32.mrf.mxu0
        %v2557 = vadd.f32 0.0, %v2556
        %2558 = vmatmul.bf16.gmra.mxu0 %v2482
        %v2559 = vpop.f32.mrf.mxu0
        %v2560 = vadd.f32 0.0, %v2559
        %v2561 = vpop.f32.mrf.mxu0
        %v2562 = vadd.f32 0.0, %v2561
        %2563 = vdwg.mxu0
        %v2564 = vadd.f32 %v2429, %v2545
        %v2565 = vadd.f32 %v2430, %v2547
        %v2566 = vadd.f32 %v2431, %v2550
        %v2567 = vadd.f32 %v2432, %v2552
        %v2568 = vadd.f32 %v2433, %v2555
        %v2569 = vadd.f32 %v2434, %v2557
        %v2570 = vadd.f32 %v2435, %v2560
        %v2571 = vadd.f32 %v2436, %v2562
        %v2572 = vld [vmem:[%s2302] sm:$0xf]
        %v2573 = vld [vmem:[%s2302 + $0x4] sm:$0x1]
        %v2574 = vld [vmem:[%s2302 + $0x8] sm:$0xf]
        %v2575 = vld [vmem:[%s2302 + $0xc] sm:$0x1]
        %v2576 = vld [vmem:[%s2302 + $0x10] sm:$0xf]
        %v2577 = vld [vmem:[%s2302 + $0x14] sm:$0x1]
        %v2578 = vld [vmem:[%s2302 + $0x18] sm:$0xf]
        %v2579 = vld [vmem:[%s2302 + $0x1c] sm:$0x1]
        %v2580 = vld [vmem:[%s2302 + $0x20] sm:$0xf]
        %v2581 = vld [vmem:[%s2302 + $0x24] sm:$0x1]
        %v2582 = vld [vmem:[%s2302 + $0x28] sm:$0xf]
        %v2583 = vld [vmem:[%s2302 + $0x2c] sm:$0x1]
        %v2584 = vld [vmem:[%s2302 + $0x30] sm:$0xf]
        %v2585 = vld [vmem:[%s2302 + $0x34] sm:$0x1]
        %v2586 = vld [vmem:[%s2302 + $0x38] sm:$0xf]
        %v2587 = vld [vmem:[%s2302 + $0x3c] sm:$0x1]
        %v2589 = vshrl.u32 %v2572, 16
        %v2591 = vrot.slane %v2589, 4
        %v2592 = vshll.u32 %v2572, 16
        %v2594 = vrot.slane %v2592, 5
        %v2595 = vor.u32 %v2591, %v2594
        %v2596 = vrot.slane %v2595, 4
        %v2598 = vshll.u32 %v2573, 16
        %v2600 = vrot.slane %v2598, 5
        %v2601 = vsel %vm1555, %v2596, %v2600
        %v2603 = vshrl.u32 %v2574, 16
        %v2605 = vrot.slane %v2603, 4
        %v2606 = vshll.u32 %v2574, 16
        %v2608 = vrot.slane %v2606, 5
        %v2609 = vor.u32 %v2605, %v2608
        %v2610 = vrot.slane %v2609, 4
        %v2612 = vshll.u32 %v2575, 16
        %v2614 = vrot.slane %v2612, 5
        %v2615 = vsel %vm1555, %v2610, %v2614
        %v2617 = vshrl.u32 %v2576, 16
        %v2619 = vrot.slane %v2617, 4
        %v2620 = vshll.u32 %v2576, 16
        %v2622 = vrot.slane %v2620, 5
        %v2623 = vor.u32 %v2619, %v2622
        %v2624 = vrot.slane %v2623, 4
        %v2626 = vshll.u32 %v2577, 16
        %v2628 = vrot.slane %v2626, 5
        %v2629 = vsel %vm1555, %v2624, %v2628
        %v2631 = vshrl.u32 %v2578, 16
        %v2633 = vrot.slane %v2631, 4
        %v2634 = vshll.u32 %v2578, 16
        %v2636 = vrot.slane %v2634, 5
        %v2637 = vor.u32 %v2633, %v2636
        %v2638 = vrot.slane %v2637, 4
        %v2640 = vshll.u32 %v2579, 16
        %v2642 = vrot.slane %v2640, 5
        %v2643 = vsel %vm1555, %v2638, %v2642
        %v2645 = vshrl.u32 %v2580, 16
        %v2647 = vrot.slane %v2645, 4
        %v2648 = vshll.u32 %v2580, 16
        %v2650 = vrot.slane %v2648, 5
        %v2651 = vor.u32 %v2647, %v2650
        %v2652 = vrot.slane %v2651, 4
        %v2654 = vshll.u32 %v2581, 16
        %v2656 = vrot.slane %v2654, 5
        %v2657 = vsel %vm1555, %v2652, %v2656
        %v2659 = vshrl.u32 %v2582, 16
        %v2661 = vrot.slane %v2659, 4
        %v2662 = vshll.u32 %v2582, 16
        %v2664 = vrot.slane %v2662, 5
        %v2665 = vor.u32 %v2661, %v2664
        %v2666 = vrot.slane %v2665, 4
        %v2668 = vshll.u32 %v2583, 16
        %v2670 = vrot.slane %v2668, 5
        %v2671 = vsel %vm1555, %v2666, %v2670
        %v2673 = vshrl.u32 %v2584, 16
        %v2675 = vrot.slane %v2673, 4
        %v2676 = vshll.u32 %v2584, 16
        %v2678 = vrot.slane %v2676, 5
        %v2679 = vor.u32 %v2675, %v2678
        %v2680 = vrot.slane %v2679, 4
        %v2682 = vshll.u32 %v2585, 16
        %v2684 = vrot.slane %v2682, 5
        %v2685 = vsel %vm1555, %v2680, %v2684
        %v2687 = vshrl.u32 %v2586, 16
        %v2689 = vrot.slane %v2687, 4
        %v2690 = vshll.u32 %v2586, 16
        %v2692 = vrot.slane %v2690, 5
        %v2693 = vor.u32 %v2689, %v2692
        %v2694 = vrot.slane %v2693, 4
        %v2696 = vshll.u32 %v2587, 16
        %v2698 = vrot.slane %v2696, 5
        %v2699 = vsel %vm1555, %v2694, %v2698
        %s2700 = scalar_lea.vmem %s4, 512
        %v2701 = vld [vmem:[%s2700] sm:$0xf]
        %v2702 = vld [vmem:[%s2700 + $0x4] sm:$0xf]
        %v2703 = vld [vmem:[%s2700 + $0x8] sm:$0xf]
        %v2704 = vld [vmem:[%s2700 + $0xc] sm:$0xf]
        %v2705 = vld [vmem:[%s2700 + $0x10] sm:$0xf]
        %v2706 = vld [vmem:[%s2700 + $0x14] sm:$0xf]
        %v2707 = vld [vmem:[%s2700 + $0x18] sm:$0xf]
        %v2708 = vld [vmem:[%s2700 + $0x1c] sm:$0xf]
        %v2709 = vld [vmem:[%s2700 + $0x20] sm:$0xf]
        %v2710 = vld [vmem:[%s2700 + $0x24] sm:$0xf]
        %v2711 = vld [vmem:[%s2700 + $0x28] sm:$0xf]
        %v2712 = vld [vmem:[%s2700 + $0x2c] sm:$0xf]
        %v2713 = vld [vmem:[%s2700 + $0x30] sm:$0xf]
        %v2714 = vld [vmem:[%s2700 + $0x34] sm:$0xf]
        %v2715 = vld [vmem:[%s2700 + $0x38] sm:$0xf]
        %v2716 = vld [vmem:[%s2700 + $0x3c] sm:$0xf]
        %v2717 = vunpack.c.l.b16 %v2601
        %v2718 = vunpack.c.l.b16 %v2615
        %v2719 = vunpack.c.l.b16 %v2629
        %v2720 = vunpack.c.l.b16 %v2643
        %v2721 = vunpack.c.l.b16 %v2657
        %v2722 = vunpack.c.l.b16 %v2671
        %v2723 = vunpack.c.l.b16 %v2685
        %v2724 = vunpack.c.l.b16 %v2699
        %v2725 = vpack.c.b16 %v2718, %v2717
        %v2726 = vpack.c.b16 %v2720, %v2719
        %v2727 = vpack.c.b16 %v2722, %v2721
        %v2728 = vpack.c.b16 %v2724, %v2723
        %v2749 = vunpack.c.l.b16 %v2701
        %v2750 = vunpack.c.l.b16 %v2702
        %v2751 = vunpack.c.l.b16 %v2703
        %v2752 = vunpack.c.l.b16 %v2704
        %v2753 = vunpack.c.l.b16 %v2705
        %v2754 = vunpack.c.l.b16 %v2706
        %v2755 = vunpack.c.l.b16 %v2707
        %v2756 = vunpack.c.l.b16 %v2708
        %v2757 = vunpack.c.l.b16 %v2709
        %v2758 = vunpack.c.l.b16 %v2710
        %v2759 = vunpack.c.l.b16 %v2711
        %v2760 = vunpack.c.l.b16 %v2712
        %v2761 = vunpack.c.l.b16 %v2713
        %v2762 = vunpack.c.l.b16 %v2714
        %v2763 = vunpack.c.l.b16 %v2715
        %v2764 = vunpack.c.l.b16 %v2716
        %v2765 = vpack.c.b16 %v2750, %v2749
        %v2766 = vpack.c.b16 %v2752, %v2751
        %v2767 = vpack.c.b16 %v2754, %v2753
        %v2768 = vpack.c.b16 %v2756, %v2755
        %v2769 = vpack.c.b16 %v2758, %v2757
        %v2770 = vpack.c.b16 %v2760, %v2759
        %v2771 = vpack.c.b16 %v2762, %v2761
        %v2772 = vpack.c.b16 %v2764, %v2763
        %2781 = vmatpush.bf16.msra.mxu0 %v2772
        %2782 = vmatpush.bf16.msra.mxu0 %v2771
        %2783 = vmatpush.bf16.msra.mxu0 %v2770
        %2784 = vmatpush.bf16.msra.mxu0 %v2769
        %2785 = vmatpush.bf16.msra.mxu0 %v2768
        %2786 = vmatpush.bf16.msra.mxu0 %v2767
        %2787 = vmatpush.bf16.msra.mxu0 %v2766
        %2788 = vmatpush.bf16.msra.mxu0 %v2765
        %2789 = vmatmul.bf16.gmra.mxu0 %v2725
        %v2790 = vpop.f32.mrf.mxu0
        %v2791 = vadd.f32 0.0, %v2790
        %v2792 = vpop.f32.mrf.mxu0
        %v2793 = vadd.f32 0.0, %v2792
        %2794 = vmatmul.bf16.gmra.mxu0 %v2726
        %v2795 = vpop.f32.mrf.mxu0
        %v2796 = vadd.f32 0.0, %v2795
        %v2797 = vpop.f32.mrf.mxu0
        %v2798 = vadd.f32 0.0, %v2797
        %2799 = vmatmul.bf16.gmra.mxu0 %v2727
        %v2800 = vpop.f32.mrf.mxu0
        %v2801 = vadd.f32 0.0, %v2800
        %v2802 = vpop.f32.mrf.mxu0
        %v2803 = vadd.f32 0.0, %v2802
        %2804 = vmatmul.bf16.gmra.mxu0 %v2728
        %v2805 = vpop.f32.mrf.mxu0
        %v2806 = vadd.f32 0.0, %v2805
        %v2807 = vpop.f32.mrf.mxu0
        %v2808 = vadd.f32 0.0, %v2807
        %2809 = vdwg.mxu0
        %v2810 = vadd.f32 %v2564, %v2791
        %v2811 = vadd.f32 %v2565, %v2793
        %v2812 = vadd.f32 %v2566, %v2796
        %v2813 = vadd.f32 %v2567, %v2798
        %v2814 = vadd.f32 %v2568, %v2801
        %v2815 = vadd.f32 %v2569, %v2803
        %v2816 = vadd.f32 %v2570, %v2806
        %v2817 = vadd.f32 %v2571, %v2808
        %2818 = vst [vmem:[%s251] sm:$0xff] %v2810
        %2819 = vst [vmem:[%s251 + $0x8] sm:$0xff] %v2811
        %2820 = vst [vmem:[%s251 + $0x10] sm:$0xff] %v2812
        %2821 = vst [vmem:[%s251 + $0x18] sm:$0xff] %v2813
        %2822 = vst [vmem:[%s251 + $0x20] sm:$0xff] %v2814
        %2823 = vst [vmem:[%s251 + $0x28] sm:$0xff] %v2815
        %2824 = vst [vmem:[%s251 + $0x30] sm:$0xff] %v2816
        %2825 = vst [vmem:[%s251 + $0x38] sm:$0xff] %v2817
        %v2826 = vadd.f32 %v2810, %v2811
        %v2827 = vadd.f32 %v2826, %v2812
        %v2828 = vadd.f32 %v2827, %v2813
        %v2829 = vadd.f32 %v2828, %v2814
        %v2830 = vadd.f32 %v2829, %v2815
        %v2831 = vadd.f32 %v2830, %v2816
        %v2832 = vadd.f32 %v2831, %v2817
        %v2833 = vrot.slane %v2832, 4
        %v2834 = vadd.f32 %v2832, %v2833
        %v2835 = vrot.slane %v2834, 2
        %v2836 = vadd.f32 %v2834, %v2835
        %v2837 = vrot.slane %v2836, 1
        %v2838 = vadd.f32 %v2836, %v2837
        %2839 = vst [vmem:[%s258] sm:$0x1] %v2838
        %v2840 = vmul.f32 %v2810, %v2810
        %v2841 = vmul.f32 %v2811, %v2811
        %v2842 = vmul.f32 %v2812, %v2812
        %v2843 = vmul.f32 %v2813, %v2813
        %v2844 = vmul.f32 %v2814, %v2814
        %v2845 = vmul.f32 %v2815, %v2815
        %v2846 = vmul.f32 %v2816, %v2816
        %v2847 = vmul.f32 %v2817, %v2817
        %v2848 = vadd.f32 %v2840, %v2841
        %v2849 = vadd.f32 %v2848, %v2842
        %v2850 = vadd.f32 %v2849, %v2843
        %v2851 = vadd.f32 %v2850, %v2844
        %v2852 = vadd.f32 %v2851, %v2845
        %v2853 = vadd.f32 %v2852, %v2846
        %v2854 = vadd.f32 %v2853, %v2847
        %v2855 = vrot.slane %v2854, 4
        %v2856 = vadd.f32 %v2854, %v2855
        %v2857 = vrot.slane %v2856, 2
        %v2858 = vadd.f32 %v2856, %v2857
        %v2859 = vrot.slane %v2858, 1
        %v2860 = vadd.f32 %v2858, %v2859
        %2861 = vst [vmem:[%s258 + $0x1] sm:$0x1] %v2860
        %s2862 = sand.u32 %s142, 1
        %s2863 = scalar_lea.sflag [#allocation4], %s2862
        %s2864 = sand.u32 %s142, 1
        %s2865 = smul.addr %s2864, 64
        %s2866 = scalar_lea.vmem [#allocation3], %s2865
        %s2867 = sand.u32 %s168, 1
        %s2868 = scalar_lea.sflag [#allocation6], %s2867
        %s2869 = sand.u32 %s168, 1
        %s2870 = smul.addr %s2869, 2
        %s2871 = scalar_lea.vmem [#allocation5], %s2870
        // Predicated region
        $region41: #{tpu_custom_call.1} parent=39 // pred_check
          %p2872 = pneg %p152
        $region42: #{tpu_custom_call.1} parent=39 // pred_check_branch
          %2874 = sbr.rel (%p2872) target = $region44
        $region43: #{tpu_custom_call.1} parent=39 // pred_region
          %2876 = vsyncadd %s2863, 0
          %s2877 = smul.addr %s24, 8
          %s2878 = smul.addr %s2877, 8
          %s2879 = scalar_lea.hbm %s5, %s2878
          %s2880 = sshll.u32 %s2866, 4
          %s2881 = int_to_ptr.vmem [resolvable:$true] %s2880
          %s2882 = sshll.u32 %s2879, 4
          %s2883 = int_to_ptr.hbm [resolvable:$true] %s2882
          %2888 = dma.vmem_to_hbm [thread:$0]  %s2881, 1024, %s2883, %s2863, 128, 128, 8
        $region44: #{tpu_custom_call.1} parent=39 // pred_fallthru
          _
        // Predicated region
        $region45: #{tpu_custom_call.1} parent=39 // pred_check
          %p2889 = pneg %p178
        $region46: #{tpu_custom_call.1} parent=39 // pred_check_branch
          %2891 = sbr.rel (%p2889) target = $region48
        $region47: #{tpu_custom_call.1} parent=39 // pred_region
          %2893 = vsyncadd %s2868, 0
          %s2894 = smul.addr %s24, 2
          %s2895 = scalar_lea.hbm %s6, %s2894
          %s2897 = sshll.u32 %s2871, 4
          %s2898 = int_to_ptr.vmem [resolvable:$true] %s2897
          %s2899 = sshll.u32 %s2895, 4
          %s2900 = int_to_ptr.hbm [resolvable:$true] %s2899
          %2902 = dma.vmem_to_hbm [thread:$0]  %s2898, 32, %s2900, %s2868
        $region48: #{tpu_custom_call.1} parent=39 // pred_fallthru
          _
      $region40: #{tpu_custom_call.1} parent=5 // pred_fallthru
        _
      %p2903 = scmp.le.s32.totalorder 2, %s19
      // Predicated region
      $region49: #{tpu_custom_call.1} parent=5 // pred_check
        %p2904 = pneg %p2903
      $region50: #{tpu_custom_call.1} parent=5 // pred_check_branch
        %2906 = sbr.rel (%p2904) target = $region52
      $region51: #{tpu_custom_call.1} parent=5 // pred_region
        %s2907 = ssub.s32 %s19, 2
        // Predicated region
        $region53: #{tpu_custom_call.1} parent=51 // pred_check
          %p2908 = pneg %p158
        $region54: #{tpu_custom_call.1} parent=51 // pred_check_branch
          %2910 = sbr.rel (%p2908) target = $region56
        $region55: #{tpu_custom_call.1} parent=51 // pred_region
          %s2911 = sand.u32 %s143, 1
          %s2912 = scalar_lea.sflag [#allocation4], %s2911
          %s2913 = sand.u32 %s143, 1
          %s2914 = smul.addr %s2913, 64
          %s2915 = scalar_lea.vmem [#allocation3], %s2914
          %2917 = dma.done %s2912, 1024
        $region56: #{tpu_custom_call.1} parent=51 // pred_fallthru
          _
        // Predicated region
        $region57: #{tpu_custom_call.1} parent=51 // pred_check
          %p2918 = pneg %p184
        $region58: #{tpu_custom_call.1} parent=51 // pred_check_branch
          %2920 = sbr.rel (%p2918) target = $region60
        $region59: #{tpu_custom_call.1} parent=51 // pred_region
          %s2921 = sand.u32 %s169, 1
          %s2922 = scalar_lea.sflag [#allocation6], %s2921
          %s2923 = sand.u32 %s169, 1
          %s2924 = smul.addr %s2923, 2
          %s2925 = scalar_lea.vmem [#allocation5], %s2924
          %2927 = dma.done %s2922, 32
        $region60: #{tpu_custom_call.1} parent=51 // pred_fallthru
          _
      $region52: #{tpu_custom_call.1} parent=5 // pred_fallthru
        _
    $region6: #{tpu_custom_call.1} parent=1 // loop_footer
      %s23 = sadd.s32 1, %s19
    $region7: #{tpu_custom_call.1} parent=1 // loop_footer_branch
      %18 = sbr.rel target = $region3
    $region8: #{tpu_custom_call.1} parent=1 // loop_exit
      _
    %2928 = vsyncpa [#allocation4], 1
    %s2929 = scalar_lea.sflag [#allocation4], 1
    %2930 = vsyncpa %s2929, 1
    %2931 = vsyncpa [#allocation6], 1
    %s2932 = scalar_lea.sflag [#allocation6], 1
    %2933 = vsyncpa %s2932, 1

</llo_original>
